<compile_context>
chip_gen: v5e
topology: v5e:2x2
jax: 0.10.0
libtpu: 0.0.40
codegen_flags: <defaults>
</compile_context>

<pallas_src>
import functools

import jax
import jax.numpy as jnp
from jax.experimental import pallas as pl
from jax.experimental.pallas import tpu as pltpu


_SMEM_SPEC = pl.BlockSpec(memory_space=pltpu.MemorySpace.SMEM)
_VMEM_LIMIT = 48 * 1024 * 1024  # explicit scoped-VMEM budget; demo uses < 2 MiB.
# TODO(synk): at real Cora/Citeseer sizes pick tm per generation (v7x: 64 MiB VMEM)
# and pad/mask the ragged last row tile (Cora N=2708 is not a multiple of 128).


def _full_spec(shape):
    """Whole-array resident block (constant index map -> DMA'd once, stays in VMEM)."""
    return pl.BlockSpec(shape, lambda *idx: (0,) * len(shape))


def _gcn_rows(adj_tile, sf, bias, slope):
    """PReLU(adj_tile @ sf + bias) for one (tm, N) row tile; bf16 MXU, f32 accumulate."""
    x = jnp.dot(adj_tile, sf, preferred_element_type=jnp.float32) + bias
    return jnp.where(x > 0.0, x, slope * x)


def _finalize_v(acc1, acc3, A, inv_n):
    """v = A @ (sigmoid(mean h_1) + sigmoid(mean h_3)), kept lane-dense as (1, n_h)."""
    c_sum = jax.nn.sigmoid(acc1 * inv_n) + jax.nn.sigmoid(acc3 * inv_n)      # (1, n_h)
    return jax.lax.dot_general(c_sum, A, (((1,), (1,)), ((), ())),
                               preferred_element_type=jnp.float32)           # (1, n_h)


# ----------------------------------------------------------------------------
# Kernel 1: feature transform + augmented-view readout (reduction over row tiles)
# ----------------------------------------------------------------------------
def readout_kernel_shared(seq1_ref, seq2_ref, w_ref, b_ref, a_ref, A_ref,
                          adjA_ref, adjB_ref,
                          sf1_ref, sf2_ref, v_ref,
                          acc1_sc, acc3_sc, *, inv_n):
    """aug_type='edge': h_1 and h_3 reuse seq1's feature transform (no seqA/seqB DMA)."""
    i = pl.program_id(0)

    @pl.when(i == 0)
    def _init():
        w = w_ref[...]
        sf1_ref[...] = jnp.dot(seq1_ref[...], w,
                               preferred_element_type=jnp.float32).astype(sf1_ref.dtype)
        sf2_ref[...] = jnp.dot(seq2_ref[...], w,
                               preferred_element_type=jnp.float32).astype(sf2_ref.dtype)
        acc1_sc[...] = jnp.zeros_like(acc1_sc)
        acc3_sc[...] = jnp.zeros_like(acc3_sc)

    bias = b_ref[...]
    slope = a_ref[0, 0]
    sf1 = sf1_ref[...]
    h1 = _gcn_rows(adjA_ref[...], sf1, bias, slope)
    h3 = _gcn_rows(adjB_ref[...], sf1, bias, slope)
    acc1_sc[...] += jnp.sum(h1, axis=0, keepdims=True)
    acc3_sc[...] += jnp.sum(h3, axis=0, keepdims=True)

    @pl.when(i == pl.num_programs(0) - 1)
    def _fin():
        v_ref[...] = _finalize_v(acc1_sc[...], acc3_sc[...], A_ref[...], inv_n)


def readout_kernel_split(seq1_ref, seq2_ref, seqA_ref, seqB_ref,
                         w_ref, b_ref, a_ref, A_ref,
                         adjA_ref, adjB_ref,
                         sf1_ref, sf2_ref, v_ref,
                         sfA_sc, sfB_sc, acc1_sc, acc3_sc, *, inv_n):
    """aug_type in ('mask','node','subgraph'): h_1 / h_3 use their own feature matrices."""
    i = pl.program_id(0)

    @pl.when(i == 0)
    def _init():
        w = w_ref[...]
        sf1_ref[...] = jnp.dot(seq1_ref[...], w,
                               preferred_element_type=jnp.float32).astype(sf1_ref.dtype)
        sf2_ref[...] = jnp.dot(seq2_ref[...], w,
                               preferred_element_type=jnp.float32).astype(sf2_ref.dtype)
        sfA_sc[...] = jnp.dot(seqA_ref[...], w,
                              preferred_element_type=jnp.float32).astype(sfA_sc.dtype)
        sfB_sc[...] = jnp.dot(seqB_ref[...], w,
                              preferred_element_type=jnp.float32).astype(sfB_sc.dtype)
        acc1_sc[...] = jnp.zeros_like(acc1_sc)
        acc3_sc[...] = jnp.zeros_like(acc3_sc)

    bias = b_ref[...]
    slope = a_ref[0, 0]
    h1 = _gcn_rows(adjA_ref[...], sfA_sc[...], bias, slope)
    h3 = _gcn_rows(adjB_ref[...], sfB_sc[...], bias, slope)
    acc1_sc[...] += jnp.sum(h1, axis=0, keepdims=True)
    acc3_sc[...] += jnp.sum(h3, axis=0, keepdims=True)

    @pl.when(i == pl.num_programs(0) - 1)
    def _fin():
        v_ref[...] = _finalize_v(acc1_sc[...], acc3_sc[...], A_ref[...], inv_n)


# ----------------------------------------------------------------------------
# Kernel 2: per-row-tile discriminator scores (fully parallel over row tiles)
# ----------------------------------------------------------------------------
def score_kernel(sf1_ref, sf2_ref, v_ref, b_ref, a_ref, bb_ref,
                 adj_ref, sc0_ref, sc2_ref):
    bias = b_ref[...]
    slope = a_ref[0, 0]
    adj = adj_ref[...]
    h0 = _gcn_rows(adj, sf1_ref[...], bias, slope)        # (tm, n_h) f32
    h2 = _gcn_rows(adj, sf2_ref[...], bias, slope)        # (tm, n_h) f32
    v = v_ref[...]                                         # (1, n_h)  f32
    two_b = 2.0 * bb_ref[0, 0]
    # sc[0, r] = h_r . (A (c_1 + c_3)) + 2*bil_b; kept as lane-dense (1, tm) rows so the
    # output stays unmasked/128-wide and no (tm, n_h) transpose is materialized.
    sc0_ref[...] = jax.lax.dot_general(v, h0, (((1,), (1,)), ((), ())),
                                       preferred_element_type=jnp.float32) + two_b
    sc2_ref[...] = jax.lax.dot_general(v, h2, (((1,), (1,)), ((), ())),
                                       preferred_element_type=jnp.float32) + two_b


# ----------------------------------------------------------------------------
# pallas_call wrappers
# ----------------------------------------------------------------------------
def _readout_call(seq1, seq2, seqA, seqB, W, b, a, A, adjA, adjB, *, tm, shared):
    N, n_in = seq1.shape
    n_h = W.shape[1]
    assert N % tm == 0, (N, tm)  # TODO(synk): pad/mask ragged last tile for real graphs.
    nt = N // tm
    inv_n = 1.0 / float(N)
    row_spec = pl.BlockSpec((tm, N), lambda i: (i, 0))

    n_feat = 2 if shared else 4
    cost = pl.CostEstimate(
        flops=int(2 * (n_feat * N * n_in * n_h + 2 * N * N * n_h + n_h * n_h)),
        transcendentals=int(2 * n_h),
        bytes_accessed=int((2 * N * N + n_feat * N * n_in + n_in * n_h
                            + 2 * N * n_h) * 2 + (n_h * n_h + 3 * n_h + 2) * 4))

    in_specs = [_full_spec((N, n_in)), _full_spec((N, n_in))]
    args = [seq1, seq2]
    if not shared:
        in_specs += [_full_spec((N, n_in)), _full_spec((N, n_in))]
        args += [seqA, seqB]
    in_specs += [_full_spec((n_in, n_h)), _full_spec((1, n_h)), _SMEM_SPEC,
                 _full_spec((n_h, n_h)), row_spec, row_spec]
    args += [W, b, a, A, adjA, adjB]

    scratch = [pltpu.VMEM((1, n_h), jnp.float32), pltpu.VMEM((1, n_h), jnp.float32)]
    if not shared:
        scratch = [pltpu.VMEM((N, n_h), jnp.bfloat16),
                   pltpu.VMEM((N, n_h), jnp.bfloat16)] + scratch

    kern = readout_kernel_shared if shared else readout_kernel_split
    return pl.pallas_call(
        functools.partial(kern, inv_n=inv_n),
        grid=(nt,),
        in_specs=in_specs,
        out_specs=(_full_spec((N, n_h)), _full_spec((N, n_h)), _full_spec((1, n_h))),
        out_shape=(jax.ShapeDtypeStruct((N, n_h), jnp.bfloat16),
                   jax.ShapeDtypeStruct((N, n_h), jnp.bfloat16),
                   jax.ShapeDtypeStruct((1, n_h), jnp.float32)),
        scratch_shapes=scratch,
        compiler_params=pltpu.CompilerParams(
            dimension_semantics=("arbitrary",),          # readout accumulation axis
            vmem_limit_bytes=_VMEM_LIMIT),
        cost_estimate=cost,
    )(*args)


def _score_call(sf1, sf2, v, b, a, bb, adj, *, tm):
    N, n_h = sf1.shape
    assert N % tm == 0, (N, tm)
    nt = N // tm
    row_spec = pl.BlockSpec((tm, N), lambda i: (i, 0))
    out_spec = pl.BlockSpec((1, tm), lambda i: (0, i))
    cost = pl.CostEstimate(
        flops=int(2 * (2 * N * N * n_h + 2 * N * n_h)),
        transcendentals=0,
        bytes_accessed=int((N * N + 2 * N * n_h) * 2 + (2 * n_h + 2 * N + 2) * 4))
    return pl.pallas_call(
        score_kernel,
        grid=(nt,),
        in_specs=[_full_spec((N, n_h)), _full_spec((N, n_h)), _full_spec((1, n_h)),
                  _full_spec((1, n_h)), _SMEM_SPEC, _SMEM_SPEC, row_spec],
        out_specs=(out_spec, out_spec),
        out_shape=(jax.ShapeDtypeStruct((1, N), jnp.float32),
                   jax.ShapeDtypeStruct((1, N), jnp.float32)),
        compiler_params=pltpu.CompilerParams(
            dimension_semantics=("parallel",),           # shards across v7x's 2 TCs
            vmem_limit_bytes=_VMEM_LIMIT),
        cost_estimate=cost,
    )(sf1, sf2, v, b, a, bb, adj)


def dgi_forward(params, seq1, seq2, seq3, seq4, adj, aug_adj1, aug_adj2,
                aug_type="edge", tm=128):
    """DGI.forward with B=1 inputs (batch dim squeezed internally); returns (1, 2N)."""
    sq = lambda x: x[0]
    bf = lambda x: x.astype(jnp.bfloat16)       # MXU operands in bf16; f32 accumulate.
    if aug_type == "edge":
        shared, seqA, seqB, adjA, adjB = True, None, None, aug_adj1, aug_adj2
    elif aug_type == "mask":
        shared, seqA, seqB, adjA, adjB = False, seq3, seq4, adj, adj
    elif aug_type in ("node", "subgraph"):
        shared, seqA, seqB, adjA, adjB = False, seq3, seq4, aug_adj1, aug_adj2
    else:
        raise AssertionError(aug_type)

    W = bf(params["W"])
    b = params["bias"].astype(jnp.float32)
    a = params["prelu_a"].astype(jnp.float32)
    A = params["bil_A"].astype(jnp.float32)
    bb = params["bil_b"].astype(jnp.float32)

    s1, s2 = bf(sq(seq1)), bf(sq(seq2))
    sA = bf(sq(seqA)) if seqA is not None else None
    sB = bf(sq(seqB)) if seqB is not None else None

    sf1, sf2, v = _readout_call(s1, s2, sA, sB, W, b, a, A,
                                bf(sq(adjA)), bf(sq(adjB)), tm=tm, shared=shared)
    sc0, sc2 = _score_call(sf1, sf2, v, b, a, bb, bf(sq(adj)), tm=tm)
    return jnp.concatenate([sc0, sc2], axis=1)             # (1, 2N)


# ----------------------------------------------------------------------------
# Pure-JAX reference (inputs bf16-rounded to match the kernel's MXU operands)
# ----------------------------------------------------------------------------
def dgi_ref(params, seq1, seq2, seq3, seq4, adj, aug_adj1, aug_adj2, aug_type):
    rd = lambda x: x.astype(jnp.bfloat16).astype(jnp.float32)
    W, b, a = rd(params["W"]), params["bias"], params["prelu_a"]
    A, bb = params["bil_A"], params["bil_b"]

    def gcn(s, ad):
        x = rd(ad)[0] @ (rd(s)[0] @ W) + b
        return jnp.where(x > 0, x, a[0, 0] * x)

    h_0 = gcn(seq1, adj)
    if aug_type == "edge":
        h_1, h_3 = gcn(seq1, aug_adj1), gcn(seq1, aug_adj2)
    elif aug_type == "mask":
        h_1, h_3 = gcn(seq3, adj), gcn(seq4, adj)
    else:
        h_1, h_3 = gcn(seq3, aug_adj1), gcn(seq4, aug_adj2)
    c_1 = jax.nn.sigmoid(jnp.mean(h_1, axis=0, keepdims=True))
    c_3 = jax.nn.sigmoid(jnp.mean(h_3, axis=0, keepdims=True))
    h_2 = gcn(seq2, adj)

    def disc(c, hp, hm):
        wc = A @ c[0]
        return jnp.concatenate([hp @ wc, hm @ wc])[None, :] + bb[0, 0]

    return disc(c_1, h_0, h_2) + disc(c_3, h_0, h_2)


# ----------------------------------------------------------------------------
# Main
# ----------------------------------------------------------------------------
if __name__ == "__main__":
    B, N, n_in, n_h = 1, 256, 64, 64
    key = jax.random.PRNGKey(0)
    ks = jax.random.split(key, 10)

    # Params per DGI.__init__: GCN(n_in, n_h, 'prelu'); Discriminator = nn.Bilinear(n_h, n_h, 1).
    bound_w = 1.0 / jnp.sqrt(n_in)
    bound_b = 1.0 / jnp.sqrt(n_h)
    params = {
        "W": jax.random.uniform(ks[0], (n_in, n_h), jnp.float32, -bound_w, bound_w),
        "bias": jnp.zeros((1, n_h), jnp.float32),         # GCN bias init fill_(0.0)
        "prelu_a": jnp.full((1, 1), 0.25, jnp.float32),   # PReLU default slope
        "bil_A": jax.random.uniform(ks[1], (n_h, n_h), jnp.float32, -bound_b, bound_b),
        "bil_b": jax.random.uniform(ks[2], (1, 1), jnp.float32, -bound_b, bound_b),
    }

    # Dense-adjacency inputs.
    seq1 = jax.random.normal(ks[3], (B, N, n_in), jnp.float32)
    seq2 = jax.random.normal(ks[4], (B, N, n_in), jnp.float32)   # shuffled features
    seq3 = jax.random.normal(ks[5], (B, N, n_in), jnp.float32)
    seq4 = jax.random.normal(ks[6], (B, N, n_in), jnp.float32)
    adj = jax.random.uniform(ks[7], (B, N, N), jnp.float32) / N
    aug_adj1 = jax.random.uniform(ks[8], (B, N, N), jnp.float32) / N
    aug_adj2 = jax.random.uniform(ks[9], (B, N, N), jnp.float32) / N

    # 'edge' exercises the shared-feature kernel; 'node' exercises the split kernel.
    for aug in ("edge", "node"):
        ret = dgi_forward(params, seq1, seq2, seq3, seq4, adj, aug_adj1, aug_adj2,
                          aug_type=aug)
        ret = jax.block_until_ready(ret)
        ref = dgi_ref(params, seq1, seq2, seq3, seq4, adj, aug_adj1, aug_adj2, aug)
        assert ret.shape == (B, 2 * N), ret.shape
        err = float(jnp.max(jnp.abs(ret - ref)))
        assert jnp.allclose(ret, ref, atol=2e-2, rtol=2e-2), (aug, err)

    print("KERNEL_OK")
</pallas_src>

<mosaic_0001>
module attributes {stable_mosaic.version = 11 : i64} {
  func.func @readout_kernel_shared(%arg0: i32, %arg1: memref<256x64xbf16, #tpu.memory_space<vmem>>, %arg2: memref<256x64xbf16, #tpu.memory_space<vmem>>, %arg3: memref<64x64xbf16, #tpu.memory_space<vmem>>, %arg4: memref<1x64xf32, #tpu.memory_space<vmem>>, %arg5: memref<1x1xf32, #tpu.memory_space<smem>>, %arg6: memref<64x64xf32, #tpu.memory_space<vmem>>, %arg7: memref<128x256xbf16, #tpu.memory_space<vmem>>, %arg8: memref<128x256xbf16, #tpu.memory_space<vmem>>, %arg9: memref<256x64xbf16, #tpu.memory_space<vmem>>, %arg10: memref<256x64xbf16, #tpu.memory_space<vmem>>, %arg11: memref<1x64xf32, #tpu.memory_space<vmem>>, %arg12: memref<1x64xf32, #tpu.memory_space<vmem>>, %arg13: memref<1x64xf32, #tpu.memory_space<vmem>>) attributes {dimension_semantics = [#tpu.dimension_semantics<arbitrary>], iteration_bounds = array<i64: 2>, scalar_prefetch = 0 : i64, scratch_operands = 2 : i64, tpu.core_type = #tpu.core_type<tc>, window_params = [{pipeline_mode = #tpu.pipeline_mode<synchronous>, transform_indices = @transform_0, window_bounds = array<i64: 256, 64>}, {pipeline_mode = #tpu.pipeline_mode<synchronous>, transform_indices = @transform_1, window_bounds = array<i64: 256, 64>}, {pipeline_mode = #tpu.pipeline_mode<synchronous>, transform_indices = @transform_2, window_bounds = array<i64: 64, 64>}, {pipeline_mode = #tpu.pipeline_mode<synchronous>, transform_indices = @transform_3, window_bounds = array<i64: 1, 64>}, {transform_indices = @transform_4, window_bounds = array<i64: 1, 1>}, {pipeline_mode = #tpu.pipeline_mode<synchronous>, transform_indices = @transform_5, window_bounds = array<i64: 64, 64>}, {transform_indices = @transform_6, window_bounds = array<i64: 128, 256>}, {transform_indices = @transform_7, window_bounds = array<i64: 128, 256>}, {pipeline_mode = #tpu.pipeline_mode<synchronous>, transform_indices = @transform_8, window_bounds = array<i64: 256, 64>}, {pipeline_mode = #tpu.pipeline_mode<synchronous>, transform_indices = @transform_9, window_bounds = array<i64: 256, 64>}, {pipeline_mode = #tpu.pipeline_mode<synchronous>, transform_indices = @transform_10, window_bounds = array<i64: 1, 64>}]} {
    %c0_i32 = arith.constant 0 : i32
    %0 = arith.cmpi eq, %arg0, %c0_i32 : i32
    %1 = arith.extui %0 : i1 to i32
    %c0_i32_0 = arith.constant 0 : i32
    %2 = arith.cmpi ne, %1, %c0_i32_0 : i32
    scf.if %2 {
      %c0_24 = arith.constant 0 : index
      %c0_25 = arith.constant 0 : index
      %37 = vector.load %arg3[%c0_24, %c0_25] : memref<64x64xbf16, #tpu.memory_space<vmem>>, vector<64x64xbf16>
      %c0_26 = arith.constant 0 : index
      %c0_27 = arith.constant 0 : index
      %38 = vector.load %arg1[%c0_26, %c0_27] : memref<256x64xbf16, #tpu.memory_space<vmem>>, vector<256x64xbf16>
      %cst_28 = arith.constant dense<0.000000e+00> : vector<256x64xf32>
      %39 = tpu.matmul %38, %37, %cst_28 {dimension_numbers = #tpu.dot_dimension_numbers<[1], [0], [0], [1], [0, 0, 1, 1], [], []>} : vector<256x64xbf16>, vector<64x64xbf16>, vector<256x64xf32> -> vector<256x64xf32>
      %40 = arith.truncf %39 : vector<256x64xf32> to vector<256x64xbf16>
      %c0_29 = arith.constant 0 : index
      %c0_30 = arith.constant 0 : index
      %41 = vector.load %arg9[%c0_29, %c0_30] : memref<256x64xbf16, #tpu.memory_space<vmem>>, vector<256x64xbf16>
      tpu.vector_store %arg9[%c0_29, %c0_30], %40 {strides = array<i32>} : memref<256x64xbf16, #tpu.memory_space<vmem>>, vector<256x64xbf16>,
      %c0_31 = arith.constant 0 : index
      %c0_32 = arith.constant 0 : index
      %42 = vector.load %arg2[%c0_31, %c0_32] : memref<256x64xbf16, #tpu.memory_space<vmem>>, vector<256x64xbf16>
      %cst_33 = arith.constant dense<0.000000e+00> : vector<256x64xf32>
      %43 = tpu.matmul %42, %37, %cst_33 {dimension_numbers = #tpu.dot_dimension_numbers<[1], [0], [0], [1], [0, 0, 1, 1], [], []>} : vector<256x64xbf16>, vector<64x64xbf16>, vector<256x64xf32> -> vector<256x64xf32>
      %44 = arith.truncf %43 : vector<256x64xf32> to vector<256x64xbf16>
      %c0_34 = arith.constant 0 : index
      %c0_35 = arith.constant 0 : index
      %45 = vector.load %arg10[%c0_34, %c0_35] : memref<256x64xbf16, #tpu.memory_space<vmem>>, vector<256x64xbf16>
      tpu.vector_store %arg10[%c0_34, %c0_35], %44 {strides = array<i32>} : memref<256x64xbf16, #tpu.memory_space<vmem>>, vector<256x64xbf16>,
      %cst_36 = arith.constant 0.000000e+00 : f32
      %46 = vector.broadcast %cst_36 : f32 to vector<1x64xf32>
      %c0_37 = arith.constant 0 : index
      %c0_38 = arith.constant 0 : index
      %47 = vector.load %arg12[%c0_37, %c0_38] : memref<1x64xf32, #tpu.memory_space<vmem>>, vector<1x64xf32>
      tpu.vector_store %arg12[%c0_37, %c0_38], %46 {strides = array<i32>} : memref<1x64xf32, #tpu.memory_space<vmem>>, vector<1x64xf32>,
      %cst_39 = arith.constant 0.000000e+00 : f32
      %48 = vector.broadcast %cst_39 : f32 to vector<1x64xf32>
      %c0_40 = arith.constant 0 : index
      %c0_41 = arith.constant 0 : index
      %49 = vector.load %arg13[%c0_40, %c0_41] : memref<1x64xf32, #tpu.memory_space<vmem>>, vector<1x64xf32>
      tpu.vector_store %arg13[%c0_40, %c0_41], %48 {strides = array<i32>} : memref<1x64xf32, #tpu.memory_space<vmem>>, vector<1x64xf32>,
    } else {
    }
    %c0 = arith.constant 0 : index
    %c0_1 = arith.constant 0 : index
    %3 = vector.load %arg4[%c0, %c0_1] : memref<1x64xf32, #tpu.memory_space<vmem>>, vector<1x64xf32>
    %c0_2 = arith.constant 0 : index
    %c0_3 = arith.constant 0 : index
    %4 = memref.load %arg5[%c0_2, %c0_3] : memref<1x1xf32, #tpu.memory_space<smem>>
    %c0_4 = arith.constant 0 : index
    %c0_5 = arith.constant 0 : index
    %5 = vector.load %arg9[%c0_4, %c0_5] : memref<256x64xbf16, #tpu.memory_space<vmem>>, vector<256x64xbf16>
    %c0_6 = arith.constant 0 : index
    %c0_7 = arith.constant 0 : index
    %6 = vector.load %arg7[%c0_6, %c0_7] : memref<128x256xbf16, #tpu.memory_space<vmem>>, vector<128x256xbf16>
    %cst = arith.constant dense<0.000000e+00> : vector<128x64xf32>
    %7 = tpu.matmul %6, %5, %cst {dimension_numbers = #tpu.dot_dimension_numbers<[1], [0], [0], [1], [0, 0, 1, 1], [], []>} : vector<128x256xbf16>, vector<256x64xbf16>, vector<128x64xf32> -> vector<128x64xf32>
    %8 = vector.broadcast %3 : vector<1x64xf32> to vector<128x64xf32>
    %9 = arith.addf %7, %8 : vector<128x64xf32>
    %cst_8 = arith.constant 0.000000e+00 : f32
    %10 = vector.broadcast %cst_8 : f32 to vector<128x64xf32>
    %11 = arith.cmpf ogt, %9, %10 : vector<128x64xf32>
    %12 = vector.broadcast %4 : f32 to vector<128x64xf32>
    %13 = arith.mulf %12, %9 : vector<128x64xf32>
    %14 = arith.select %11, %9, %13 : vector<128x64xi1>, vector<128x64xf32>
    %c0_9 = arith.constant 0 : index
    %c0_10 = arith.constant 0 : index
    %15 = vector.load %arg8[%c0_9, %c0_10] : memref<128x256xbf16, #tpu.memory_space<vmem>>, vector<128x256xbf16>
    %cst_11 = arith.constant dense<0.000000e+00> : vector<128x64xf32>
    %16 = tpu.matmul %15, %5, %cst_11 {dimension_numbers = #tpu.dot_dimension_numbers<[1], [0], [0], [1], [0, 0, 1, 1], [], []>} : vector<128x256xbf16>, vector<256x64xbf16>, vector<128x64xf32> -> vector<128x64xf32>
    %17 = vector.broadcast %3 : vector<1x64xf32> to vector<128x64xf32>
    %18 = arith.addf %16, %17 : vector<128x64xf32>
    %cst_12 = arith.constant 0.000000e+00 : f32
    %19 = vector.broadcast %cst_12 : f32 to vector<128x64xf32>
    %20 = arith.cmpf ogt, %18, %19 : vector<128x64xf32>
    %21 = vector.broadcast %4 : f32 to vector<128x64xf32>
    %22 = arith.mulf %21, %18 : vector<128x64xf32>
    %23 = arith.select %20, %18, %22 : vector<128x64xi1>, vector<128x64xf32>
    %c0_13 = arith.constant 0 : index
    %c0_14 = arith.constant 0 : index
    %24 = vector.load %arg12[%c0_13, %c0_14] : memref<1x64xf32, #tpu.memory_space<vmem>>, vector<1x64xf32>
    %cst_15 = arith.constant dense<0.000000e+00> : vector<64xf32>
    %25 = vector.multi_reduction <add>, %14, %cst_15 [0] : vector<128x64xf32> to vector<64xf32>
    %26 = vector.shape_cast %25 : vector<64xf32> to vector<1x64xf32>
    %27 = arith.addf %24, %26 : vector<1x64xf32>
    %c0_16 = arith.constant 0 : index
    %c0_17 = arith.constant 0 : index
    %28 = vector.load %arg12[%c0_16, %c0_17] : memref<1x64xf32, #tpu.memory_space<vmem>>, vector<1x64xf32>
    tpu.vector_store %arg12[%c0_16, %c0_17], %27 {strides = array<i32>} : memref<1x64xf32, #tpu.memory_space<vmem>>, vector<1x64xf32>,
    %c0_18 = arith.constant 0 : index
    %c0_19 = arith.constant 0 : index
    %29 = vector.load %arg13[%c0_18, %c0_19] : memref<1x64xf32, #tpu.memory_space<vmem>>, vector<1x64xf32>
    %cst_20 = arith.constant dense<0.000000e+00> : vector<64xf32>
    %30 = vector.multi_reduction <add>, %23, %cst_20 [0] : vector<128x64xf32> to vector<64xf32>
    %31 = vector.shape_cast %30 : vector<64xf32> to vector<1x64xf32>
    %32 = arith.addf %29, %31 : vector<1x64xf32>
    %c0_21 = arith.constant 0 : index
    %c0_22 = arith.constant 0 : index
    %33 = vector.load %arg13[%c0_21, %c0_22] : memref<1x64xf32, #tpu.memory_space<vmem>>, vector<1x64xf32>
    tpu.vector_store %arg13[%c0_21, %c0_22], %32 {strides = array<i32>} : memref<1x64xf32, #tpu.memory_space<vmem>>, vector<1x64xf32>,
    %c1_i32 = arith.constant 1 : i32
    %34 = arith.cmpi eq, %arg0, %c1_i32 : i32
    %35 = arith.extui %34 : i1 to i32
    %c0_i32_23 = arith.constant 0 : i32
    %36 = arith.cmpi ne, %35, %c0_i32_23 : i32
    scf.if %36 {
      %c0_24 = arith.constant 0 : index
      %c0_25 = arith.constant 0 : index
      %37 = vector.load %arg12[%c0_24, %c0_25] : memref<1x64xf32, #tpu.memory_space<vmem>>, vector<1x64xf32>
      %c0_26 = arith.constant 0 : index
      %c0_27 = arith.constant 0 : index
      %38 = vector.load %arg13[%c0_26, %c0_27] : memref<1x64xf32, #tpu.memory_space<vmem>>, vector<1x64xf32>
      %c0_28 = arith.constant 0 : index
      %c0_29 = arith.constant 0 : index
      %39 = vector.load %arg6[%c0_28, %c0_29] : memref<64x64xf32, #tpu.memory_space<vmem>>, vector<64x64xf32>
      %cst_30 = arith.constant 3.906250e-03 : f32
      %40 = vector.broadcast %cst_30 : f32 to vector<1x64xf32>
      %41 = arith.mulf %37, %40 : vector<1x64xf32>
      %42 = arith.negf %41 : vector<1x64xf32>
      %43 = math.exp %42 : vector<1x64xf32>
      %cst_31 = arith.constant 1.000000e+00 : f32
      %44 = vector.broadcast %cst_31 : f32 to vector<1x64xf32>
      %45 = arith.addf %44, %43 : vector<1x64xf32>
      %46 = arith.divf %44, %45 : vector<1x64xf32>
      %cst_32 = arith.constant 3.906250e-03 : f32
      %47 = vector.broadcast %cst_32 : f32 to vector<1x64xf32>
      %48 = arith.mulf %38, %47 : vector<1x64xf32>
      %49 = arith.negf %48 : vector<1x64xf32>
      %50 = math.exp %49 : vector<1x64xf32>
      %cst_33 = arith.constant 1.000000e+00 : f32
      %51 = vector.broadcast %cst_33 : f32 to vector<1x64xf32>
      %52 = arith.addf %51, %50 : vector<1x64xf32>
      %53 = arith.divf %51, %52 : vector<1x64xf32>
      %54 = arith.addf %46, %53 : vector<1x64xf32>
      %cst_34 = arith.constant dense<0.000000e+00> : vector<1x64xf32>
      %55 = tpu.matmul %54, %39, %cst_34 {dimension_numbers = #tpu.dot_dimension_numbers<[1], [1], [0], [0], [0, 0, 1, 0], [], []>} : vector<1x64xf32>, vector<64x64xf32>, vector<1x64xf32> -> vector<1x64xf32>
      %c0_35 = arith.constant 0 : index
      %c0_36 = arith.constant 0 : index
      %56 = vector.load %arg11[%c0_35, %c0_36] : memref<1x64xf32, #tpu.memory_space<vmem>>, vector<1x64xf32>
      tpu.vector_store %arg11[%c0_35, %c0_36], %55 {strides = array<i32>} : memref<1x64xf32, #tpu.memory_space<vmem>>, vector<1x64xf32>,
    } else {
    }
    return
  }
  func.func @transform_0(%arg0: i32) -> (i32, i32) {
    %c0_i32 = arith.constant 0 : i32
    %c0_i32_0 = arith.constant 0 : i32
    %c0_i32_1 = arith.constant 0 : i32
    return %c0_i32, %c0_i32_0 : i32, i32
  }
  func.func @transform_1(%arg0: i32) -> (i32, i32) {
    %c0_i32 = arith.constant 0 : i32
    %c0_i32_0 = arith.constant 0 : i32
    %c0_i32_1 = arith.constant 0 : i32
    return %c0_i32, %c0_i32_0 : i32, i32
  }
  func.func @transform_2(%arg0: i32) -> (i32, i32) {
    %c0_i32 = arith.constant 0 : i32
    %c0_i32_0 = arith.constant 0 : i32
    %c0_i32_1 = arith.constant 0 : i32
    return %c0_i32, %c0_i32_0 : i32, i32
  }
  func.func @transform_3(%arg0: i32) -> (i32, i32) {
    %c0_i32 = arith.constant 0 : i32
    %c0_i32_0 = arith.constant 0 : i32
    %c0_i32_1 = arith.constant 0 : i32
    return %c0_i32, %c0_i32_0 : i32, i32
  }
  func.func @transform_4(%arg0: i32) -> (i32, i32) {
    %c0_i32 = arith.constant 0 : i32
    %c0_i32_0 = arith.constant 0 : i32
    %c0_i32_1 = arith.constant 0 : i32
    return %c0_i32, %c0_i32_0 : i32, i32
  }
  func.func @transform_5(%arg0: i32) -> (i32, i32) {
    %c0_i32 = arith.constant 0 : i32
    %c0_i32_0 = arith.constant 0 : i32
    %c0_i32_1 = arith.constant 0 : i32
    return %c0_i32, %c0_i32_0 : i32, i32
  }
  func.func @transform_6(%arg0: i32) -> (i32, i32) {
    %c0_i32 = arith.constant 0 : i32
    %c0_i32_0 = arith.constant 0 : i32
    return %arg0, %c0_i32 : i32, i32
  }
  func.func @transform_7(%arg0: i32) -> (i32, i32) {
    %c0_i32 = arith.constant 0 : i32
    %c0_i32_0 = arith.constant 0 : i32
    return %arg0, %c0_i32 : i32, i32
  }
  func.func @transform_8(%arg0: i32) -> (i32, i32) {
    %c0_i32 = arith.constant 0 : i32
    %c0_i32_0 = arith.constant 0 : i32
    %c0_i32_1 = arith.constant 0 : i32
    return %c0_i32, %c0_i32_0 : i32, i32
  }
  func.func @transform_9(%arg0: i32) -> (i32, i32) {
    %c0_i32 = arith.constant 0 : i32
    %c0_i32_0 = arith.constant 0 : i32
    %c0_i32_1 = arith.constant 0 : i32
    return %c0_i32, %c0_i32_0 : i32, i32
  }
  func.func @transform_10(%arg0: i32) -> (i32, i32) {
    %c0_i32 = arith.constant 0 : i32
    %c0_i32_0 = arith.constant 0 : i32
    %c0_i32_1 = arith.constant 0 : i32
    return %c0_i32, %c0_i32_0 : i32, i32
  }
}

</mosaic_0001>

<llo_original>
// kernel: tpu_custom_call.1
$region0: #{tpu_custom_call.1}
  #allocation0 [shape = 'u32[]', space=smem, size = 0x4, offset = 0x4, fixed_abs, tag = 'smem constant byte address 0x4 - core index']
  #allocation1 [shape = 'u32[72,128]{1,0:T(1,128)}', space=vmem, size = 0x9000, scoped, tag = 'internal scratch']
  #allocation2 [shape = 'f32[1,64]{1,0:T(1,128)}', space=vmem, size = 0x200, scoped, tag = 'scratch operand']
  #allocation3 [shape = 'f32[1,64]{1,0:T(1,128)}', space=vmem, size = 0x200, scoped, tag = 'scratch operand']
  #allocation4 [shape = 'f32[1,1]{1,0:T(1,128)S(6)}', space=smem, size = 0x200, scoped, tag = 'scoped memory for tpu_custom_call.1']
  %s0 = inlined_call_operand.vmem [shape: bf16[256,64], index: 0, kind: input, shape index: {}]
  %s1 = inlined_call_operand.vmem [shape: bf16[256,64], index: 1, kind: input, shape index: {}]
  %s2 = inlined_call_operand.vmem [shape: bf16[64,64], index: 2, kind: input, shape index: {}]
  %s3 = inlined_call_operand.vmem [shape: f32[1,64], index: 3, kind: input, shape index: {}]
  %s4 = inlined_call_operand.<no memory space> [shape: f32[1,1], index: 4, kind: input, shape index: {}]
  %s5 = inlined_call_operand.vmem [shape: f32[64,64], index: 5, kind: input, shape index: {}]
  %s6 = inlined_call_operand.vmem [shape: bf16[256,256], index: 6, kind: input, shape index: {}]
  %s7 = inlined_call_operand.hbm [shape: bf16[256,256], index: 7, kind: input, shape index: {}]
  %s8 = inlined_call_operand.vmem [shape: bf16[256,64], index: 8, kind: output, shape index: {0}]
  %s9 = inlined_call_operand.vmem [shape: bf16[256,64], index: 9, kind: output, shape index: {1}]
  %s10 = inlined_call_operand.hbm [shape: f32[1,64], index: 10, kind: output, shape index: {2}]
  %11 = xla_tuple %s8, %s9, %s10
  %s12 = sld [smem:[#allocation0]]
  $region93: #{tpu_custom_call.1} parent=0
    _
  %s14 = ssub.s32 1, %s12
  %s15 = scalar_select 0, %s14, %s12
  %16 = sst [smem:[#allocation4]] %s4
  $region1: #{tpu_custom_call.1} parent=0
    #allocation5 [shape = 'u8[131072]{0}', space=vmem, size = 0x20000, scoped, tag = 'input window, operand 7']
    #allocation6 [shape = 's32[2]{0}', space=sflag, size = 0x8, scoped, tag = 'scoped memory for tpu_custom_call.1']
    #allocation7 [shape = 's32[2]{0}', space=sflag, size = 0x8, scoped, tag = 'scoped memory for tpu_custom_call.1']
    #allocation8 [shape = 'u8[512]{0}', space=vmem, size = 0x400, scoped, tag = 'output window, operand 2, single buffered']
    %17 = vsyncpa [#allocation6], 0
    %s18 = scalar_lea.sflag [#allocation6], 1
    %19 = vsyncpa %s18, 0
    %20 = vsyncpa [#allocation7], 0
    loop: start=0, step=1, limit=4
    $region2: #{tpu_custom_call.1} parent=1 // loop_pre_header
      _
    $region3: #{tpu_custom_call.1} parent=1 // loop_header
      %s22 = sphi 0, %s26
      %p23 = scmp.ge.s32.totalorder %s22, 4
      %s30 = sphi 0, %s30
      %s32 = sphi 0, %s30
      %s33 = sphi 0, %s32
      %s47 = sphi 0, %s33
      %s51 = sphi 0, %s51
      %s53 = sphi 0, %s51
      %s54 = sphi 0, %s53
      %s68 = sphi 0, %s54
      %s72 = sphi 0, %s72
      %s74 = sphi 0, %s72
      %s75 = sphi 0, %s74
      %s89 = sphi 0, %s75
      %s93 = sphi 0, %s93
      %s95 = sphi 0, %s93
      %s96 = sphi 0, %s95
      %s110 = sphi 0, %s96
      %s114 = sphi 0, %s114
      %s116 = sphi 0, %s114
      %s117 = sphi 0, %s116
      %s131 = sphi 0, %s117
      %s135 = sphi 0, %s135
      %s137 = sphi 0, %s135
      %s138 = sphi 0, %s137
      %s152 = sphi 0, %s138
      %s158 = sphi 0, %s160
      %s161 = sphi 0, %s158
      %s162 = sphi 0, %s161
      %s178 = sphi 0, %s162
      %s184 = sphi 0, %s186
      %s187 = sphi 0, %s184
      %s188 = sphi 0, %s187
      %s204 = sphi 0, %s188
      %s208 = sphi 0, %s208
      %s210 = sphi 0, %s208
      %s211 = sphi 0, %s210
      %s225 = sphi 0, %s211
      %s229 = sphi 0, %s229
      %s231 = sphi 0, %s229
      %s232 = sphi 0, %s231
      %s246 = sphi 0, %s232
      %s250 = sphi 0, %s250
      %s252 = sphi 0, %s250
      %s253 = sphi 0, %s252
      %s267 = sphi 0, %s253
    $region4: #{tpu_custom_call.1} parent=1 // loop_header_branch
      %25 = sbr.rel (%p23) target = $region8
    $region5: #{tpu_custom_call.1} parent=1 // loop_body
      %s27 = ssub.s32 %s22, 1
      %s28 = ssub.s32 %s22, 2
      %s29 = sadd.s32 %s22, 1
      %s31 = sadd.s32 %s30, 1
      %p34 = scmp.eq.s32.totalorder %s22, 1
      %p35 = scmp.ne.s32.totalorder %s30, %s32
      %p36 = scmp.eq.s32.totalorder %s22, 0
      %p37 = por %p35, %p36
      %p38 = scmp.ne.s32.totalorder %s30, %s32
      %p39 = scmp.eq.s32.totalorder %s27, 1
      %p40 = por %p38, %p39
      %p41 = scmp.ne.s32.totalorder %s32, %s33
      %p42 = scmp.eq.s32.totalorder %s27, 0
      %p43 = por %p41, %p42
      %p44 = scmp.ne.s32.totalorder %s32, %s33
      %p45 = scmp.eq.s32.totalorder %s28, 1
      %p46 = por %p44, %p45
      %p48 = scmp.ne.s32.totalorder %s33, %s47
      %p49 = scmp.eq.s32.totalorder %s28, 0
      %p50 = por %p48, %p49
      %s52 = sadd.s32 %s51, 1
      %p55 = scmp.eq.s32.totalorder %s22, 1
      %p56 = scmp.ne.s32.totalorder %s51, %s53
      %p57 = scmp.eq.s32.totalorder %s22, 0
      %p58 = por %p56, %p57
      %p59 = scmp.ne.s32.totalorder %s51, %s53
      %p60 = scmp.eq.s32.totalorder %s27, 1
      %p61 = por %p59, %p60
      %p62 = scmp.ne.s32.totalorder %s53, %s54
      %p63 = scmp.eq.s32.totalorder %s27, 0
      %p64 = por %p62, %p63
      %p65 = scmp.ne.s32.totalorder %s53, %s54
      %p66 = scmp.eq.s32.totalorder %s28, 1
      %p67 = por %p65, %p66
      %p69 = scmp.ne.s32.totalorder %s54, %s68
      %p70 = scmp.eq.s32.totalorder %s28, 0
      %p71 = por %p69, %p70
      %s73 = sadd.s32 %s72, 1
      %p76 = scmp.eq.s32.totalorder %s22, 1
      %p77 = scmp.ne.s32.totalorder %s72, %s74
      %p78 = scmp.eq.s32.totalorder %s22, 0
      %p79 = por %p77, %p78
      %p80 = scmp.ne.s32.totalorder %s72, %s74
      %p81 = scmp.eq.s32.totalorder %s27, 1
      %p82 = por %p80, %p81
      %p83 = scmp.ne.s32.totalorder %s74, %s75
      %p84 = scmp.eq.s32.totalorder %s27, 0
      %p85 = por %p83, %p84
      %p86 = scmp.ne.s32.totalorder %s74, %s75
      %p87 = scmp.eq.s32.totalorder %s28, 1
      %p88 = por %p86, %p87
      %p90 = scmp.ne.s32.totalorder %s75, %s89
      %p91 = scmp.eq.s32.totalorder %s28, 0
      %p92 = por %p90, %p91
      %s94 = sadd.s32 %s93, 1
      %p97 = scmp.eq.s32.totalorder %s22, 1
      %p98 = scmp.ne.s32.totalorder %s93, %s95
      %p99 = scmp.eq.s32.totalorder %s22, 0
      %p100 = por %p98, %p99
      %p101 = scmp.ne.s32.totalorder %s93, %s95
      %p102 = scmp.eq.s32.totalorder %s27, 1
      %p103 = por %p101, %p102
      %p104 = scmp.ne.s32.totalorder %s95, %s96
      %p105 = scmp.eq.s32.totalorder %s27, 0
      %p106 = por %p104, %p105
      %p107 = scmp.ne.s32.totalorder %s95, %s96
      %p108 = scmp.eq.s32.totalorder %s28, 1
      %p109 = por %p107, %p108
      %p111 = scmp.ne.s32.totalorder %s96, %s110
      %p112 = scmp.eq.s32.totalorder %s28, 0
      %p113 = por %p111, %p112
      %s115 = sadd.s32 %s114, 1
      %p118 = scmp.eq.s32.totalorder %s22, 1
      %p119 = scmp.ne.s32.totalorder %s114, %s116
      %p120 = scmp.eq.s32.totalorder %s22, 0
      %p121 = por %p119, %p120
      %p122 = scmp.ne.s32.totalorder %s114, %s116
      %p123 = scmp.eq.s32.totalorder %s27, 1
      %p124 = por %p122, %p123
      %p125 = scmp.ne.s32.totalorder %s116, %s117
      %p126 = scmp.eq.s32.totalorder %s27, 0
      %p127 = por %p125, %p126
      %p128 = scmp.ne.s32.totalorder %s116, %s117
      %p129 = scmp.eq.s32.totalorder %s28, 1
      %p130 = por %p128, %p129
      %p132 = scmp.ne.s32.totalorder %s117, %s131
      %p133 = scmp.eq.s32.totalorder %s28, 0
      %p134 = por %p132, %p133
      %s136 = sadd.s32 %s135, 1
      %p139 = scmp.eq.s32.totalorder %s22, 1
      %p140 = scmp.ne.s32.totalorder %s135, %s137
      %p141 = scmp.eq.s32.totalorder %s22, 0
      %p142 = por %p140, %p141
      %p143 = scmp.ne.s32.totalorder %s135, %s137
      %p144 = scmp.eq.s32.totalorder %s27, 1
      %p145 = por %p143, %p144
      %p146 = scmp.ne.s32.totalorder %s137, %s138
      %p147 = scmp.eq.s32.totalorder %s27, 0
      %p148 = por %p146, %p147
      %p149 = scmp.ne.s32.totalorder %s137, %s138
      %p150 = scmp.eq.s32.totalorder %s28, 1
      %p151 = por %p149, %p150
      %p153 = scmp.ne.s32.totalorder %s138, %s152
      %p154 = scmp.eq.s32.totalorder %s28, 0
      %p155 = por %p153, %p154
      %s156 = ssub.s32 %s22, %s29
      %p157 = scmp.eq.s32.totalorder %s156, 0
      %s159 = sadd.s32 %s158, 1
      %s160 = scalar_select %p157, %s158, %s159
      %p163 = pneg %p157
      %p164 = scmp.eq.s32.totalorder %s22, 1
      %p165 = por %p163, %p164
      %p166 = scmp.ne.s32.totalorder %s158, %s161
      %p167 = scmp.eq.s32.totalorder %s22, 0
      %p168 = por %p166, %p167
      %p169 = scmp.ne.s32.totalorder %s158, %s161
      %p170 = scmp.eq.s32.totalorder %s27, 1
      %p171 = por %p169, %p170
      %p172 = scmp.ne.s32.totalorder %s161, %s162
      %p173 = scmp.eq.s32.totalorder %s27, 0
      %p174 = por %p172, %p173
      %p175 = scmp.ne.s32.totalorder %s161, %s162
      %p176 = scmp.eq.s32.totalorder %s28, 1
      %p177 = por %p175, %p176
      %p179 = scmp.ne.s32.totalorder %s162, %s178
      %p180 = scmp.eq.s32.totalorder %s28, 0
      %p181 = por %p179, %p180
      %s182 = ssub.s32 %s22, %s29
      %p183 = scmp.eq.s32.totalorder %s182, 0
      %s185 = sadd.s32 %s184, 1
      %s186 = scalar_select %p183, %s184, %s185
      %p189 = pneg %p183
      %p190 = scmp.eq.s32.totalorder %s22, 1
      %p191 = por %p189, %p190
      %p192 = scmp.ne.s32.totalorder %s184, %s187
      %p193 = scmp.eq.s32.totalorder %s22, 0
      %p194 = por %p192, %p193
      %p195 = scmp.ne.s32.totalorder %s184, %s187
      %p196 = scmp.eq.s32.totalorder %s27, 1
      %p197 = por %p195, %p196
      %p198 = scmp.ne.s32.totalorder %s187, %s188
      %p199 = scmp.eq.s32.totalorder %s27, 0
      %p200 = por %p198, %p199
      %p201 = scmp.ne.s32.totalorder %s187, %s188
      %p202 = scmp.eq.s32.totalorder %s28, 1
      %p203 = por %p201, %p202
      %p205 = scmp.ne.s32.totalorder %s188, %s204
      %p206 = scmp.eq.s32.totalorder %s28, 0
      %p207 = por %p205, %p206
      %s209 = sadd.s32 %s208, 1
      %p212 = scmp.eq.s32.totalorder %s22, 1
      %p213 = scmp.ne.s32.totalorder %s208, %s210
      %p214 = scmp.eq.s32.totalorder %s22, 0
      %p215 = por %p213, %p214
      %p216 = scmp.ne.s32.totalorder %s208, %s210
      %p217 = scmp.eq.s32.totalorder %s27, 1
      %p218 = por %p216, %p217
      %p219 = scmp.ne.s32.totalorder %s210, %s211
      %p220 = scmp.eq.s32.totalorder %s27, 0
      %p221 = por %p219, %p220
      %p222 = scmp.ne.s32.totalorder %s210, %s211
      %p223 = scmp.eq.s32.totalorder %s28, 1
      %p224 = por %p222, %p223
      %p226 = scmp.ne.s32.totalorder %s211, %s225
      %p227 = scmp.eq.s32.totalorder %s28, 0
      %p228 = por %p226, %p227
      %s230 = sadd.s32 %s229, 1
      %p233 = scmp.eq.s32.totalorder %s22, 1
      %p234 = scmp.ne.s32.totalorder %s229, %s231
      %p235 = scmp.eq.s32.totalorder %s22, 0
      %p236 = por %p234, %p235
      %p237 = scmp.ne.s32.totalorder %s229, %s231
      %p238 = scmp.eq.s32.totalorder %s27, 1
      %p239 = por %p237, %p238
      %p240 = scmp.ne.s32.totalorder %s231, %s232
      %p241 = scmp.eq.s32.totalorder %s27, 0
      %p242 = por %p240, %p241
      %p243 = scmp.ne.s32.totalorder %s231, %s232
      %p244 = scmp.eq.s32.totalorder %s28, 1
      %p245 = por %p243, %p244
      %p247 = scmp.ne.s32.totalorder %s232, %s246
      %p248 = scmp.eq.s32.totalorder %s28, 0
      %p249 = por %p247, %p248
      %s251 = sadd.s32 %s250, 1
      %p254 = scmp.eq.s32.totalorder %s22, 1
      %p255 = scmp.ne.s32.totalorder %s250, %s252
      %p256 = scmp.eq.s32.totalorder %s22, 0
      %p257 = por %p255, %p256
      %p258 = scmp.ne.s32.totalorder %s250, %s252
      %p259 = scmp.eq.s32.totalorder %s27, 1
      %p260 = por %p258, %p259
      %p261 = scmp.ne.s32.totalorder %s252, %s253
      %p262 = scmp.eq.s32.totalorder %s27, 0
      %p263 = por %p261, %p262
      %p264 = scmp.ne.s32.totalorder %s252, %s253
      %p265 = scmp.eq.s32.totalorder %s28, 1
      %p266 = por %p264, %p265
      %p268 = scmp.ne.s32.totalorder %s253, %s267
      %p269 = scmp.eq.s32.totalorder %s28, 0
      %p270 = por %p268, %p269
      %p271 = scmp.le.s32.totalorder 1, %s22
      %p272 = scmp.lt.s32.totalorder %s22, 3
      %p273 = pnand %p271, %p272
      %p274 = pneg %p273
      // Predicated region
      $region9: #{tpu_custom_call.1} parent=5 // pred_check
        _
      $region10: #{tpu_custom_call.1} parent=5 // pred_check_branch
        %276 = sbr.rel (%p273) target = $region12
      $region11: #{tpu_custom_call.1} parent=5 // pred_region
        %s277 = ssub.s32 %s22, 1
        // Predicated region
        $region13: #{tpu_custom_call.1} parent=11 // pred_check
          %p278 = pneg %p43
        $region14: #{tpu_custom_call.1} parent=11 // pred_check_branch
          %280 = sbr.rel (%p278) target = $region16
        $region15: #{tpu_custom_call.1} parent=11 // pred_region
          _
        $region16: #{tpu_custom_call.1} parent=11 // pred_fallthru
          _
        // Predicated region
        $region17: #{tpu_custom_call.1} parent=11 // pred_check
          %p281 = pneg %p64
        $region18: #{tpu_custom_call.1} parent=11 // pred_check_branch
          %283 = sbr.rel (%p281) target = $region20
        $region19: #{tpu_custom_call.1} parent=11 // pred_region
          _
        $region20: #{tpu_custom_call.1} parent=11 // pred_fallthru
          _
        // Predicated region
        $region21: #{tpu_custom_call.1} parent=11 // pred_check
          %p284 = pneg %p85
        $region22: #{tpu_custom_call.1} parent=11 // pred_check_branch
          %286 = sbr.rel (%p284) target = $region24
        $region23: #{tpu_custom_call.1} parent=11 // pred_region
          _
        $region24: #{tpu_custom_call.1} parent=11 // pred_fallthru
          _
        // Predicated region
        $region25: #{tpu_custom_call.1} parent=11 // pred_check
          %p287 = pneg %p106
        $region26: #{tpu_custom_call.1} parent=11 // pred_check_branch
          %289 = sbr.rel (%p287) target = $region28
        $region27: #{tpu_custom_call.1} parent=11 // pred_region
          _
        $region28: #{tpu_custom_call.1} parent=11 // pred_fallthru
          _
        // Predicated region
        $region29: #{tpu_custom_call.1} parent=11 // pred_check
          %p290 = pneg %p127
        $region30: #{tpu_custom_call.1} parent=11 // pred_check_branch
          %292 = sbr.rel (%p290) target = $region32
        $region31: #{tpu_custom_call.1} parent=11 // pred_region
          _
        $region32: #{tpu_custom_call.1} parent=11 // pred_fallthru
          _
        // Predicated region
        $region33: #{tpu_custom_call.1} parent=11 // pred_check
          %p293 = pneg %p148
        $region34: #{tpu_custom_call.1} parent=11 // pred_check_branch
          %295 = sbr.rel (%p293) target = $region36
        $region35: #{tpu_custom_call.1} parent=11 // pred_region
          _
        $region36: #{tpu_custom_call.1} parent=11 // pred_fallthru
          _
      $region12: #{tpu_custom_call.1} parent=5 // pred_fallthru
        _
      %p296 = scmp.lt.s32.totalorder %s22, 2
      // Predicated region
      $region37: #{tpu_custom_call.1} parent=5 // pred_check
        %p297 = pneg %p296
      $region38: #{tpu_custom_call.1} parent=5 // pred_check_branch
        %299 = sbr.rel (%p297) target = $region40
      $region39: #{tpu_custom_call.1} parent=5 // pred_region
        // Predicated region
        $region41: #{tpu_custom_call.1} parent=39 // pred_check
          %p300 = pneg %p168
        $region42: #{tpu_custom_call.1} parent=39 // pred_check_branch
          %302 = sbr.rel (%p300) target = $region44
        $region43: #{tpu_custom_call.1} parent=39 // pred_region
          %s303 = smul.u32 16, %s22
          %p304 = scmp.lt.s32.totalorder %s303, 31
          %s305 = scalar_select %p304, %s303, 31
          %s306 = smul.addr %s305, 2
          %s307 = smul.addr %s306, 4
          %s308 = scalar_lea.vmem %s6, %s307
          %s309 = smul.u32 16, %s22
        $region44: #{tpu_custom_call.1} parent=39 // pred_fallthru
          _
        // Predicated region
        $region45: #{tpu_custom_call.1} parent=39 // pred_check
          %p310 = pneg %p194
        $region46: #{tpu_custom_call.1} parent=39 // pred_check_branch
          %312 = sbr.rel (%p310) target = $region48
        $region47: #{tpu_custom_call.1} parent=39 // pred_region
          %s313 = sand.u32 %s184, 1
          %s314 = scalar_lea.sflag [#allocation6], %s313
          %s315 = sand.u32 %s184, 1
          %s316 = smul.addr %s315, 128
          %s317 = scalar_lea.vmem [#allocation5], %s316
          %s318 = smul.u32 16, %s22
          %320 = vsyncadd %s314, 0
          %s321 = smul.addr %s318, 2
          %s322 = smul.addr %s321, 4
          %s323 = scalar_lea.hbm %s7, %s322
          %s324 = sshll.u32 %s323, 4
          %s325 = int_to_ptr.hbm [resolvable:$true] %s324
          %s326 = sshll.u32 %s317, 4
          %s327 = int_to_ptr.vmem [resolvable:$true] %s326
          %332 = dma.hbm_to_vmem [thread:$0]  %s325, 2048, %s327, %s314, 128, 128, 8
        $region48: #{tpu_custom_call.1} parent=39 // pred_fallthru
          _
      $region40: #{tpu_custom_call.1} parent=5 // pred_fallthru
        _
      %p333 = scmp.le.s32.totalorder 1, %s22
      %p334 = scmp.lt.s32.totalorder %s22, 3
      %p335 = pnand %p333, %p334
      %p336 = pneg %p335
      // Predicated region
      $region49: #{tpu_custom_call.1} parent=5 // pred_check
        _
      $region50: #{tpu_custom_call.1} parent=5 // pred_check_branch
        %338 = sbr.rel (%p335) target = $region52
      $region51: #{tpu_custom_call.1} parent=5 // pred_region
        %s339 = ssub.s32 %s22, 1
        %s340 = sand.u32 %s187, 1
        %s341 = scalar_lea.sflag [#allocation6], %s340
        %s342 = sand.u32 %s187, 1
        %s343 = smul.addr %s342, 128
        %s344 = scalar_lea.vmem [#allocation5], %s343
        // Predicated region
        $region53: #{tpu_custom_call.1} parent=51 // pred_check
          %p345 = pneg %p200
        $region54: #{tpu_custom_call.1} parent=51 // pred_check_branch
          %347 = sbr.rel (%p345) target = $region56
        $region55: #{tpu_custom_call.1} parent=51 // pred_region
          %349 = dma.done %s341, 2048
        $region56: #{tpu_custom_call.1} parent=51 // pred_fallthru
          _
        %p350 = pneg %p43
        %p351 = pneg %p40
        %p352 = pneg %p64
        %p353 = pneg %p61
        %p354 = pneg %p85
        %p355 = pneg %p82
        %p356 = pneg %p106
        %p357 = pneg %p103
        %p358 = pneg %p127
        %p359 = pneg %p124
        %p360 = pneg %p148
        %p361 = pneg %p145
        %s362 = smul.u32 16, %s27
        %p363 = scmp.lt.s32.totalorder %s362, 31
        %s364 = scalar_select %p363, %s362, 31
        %s365 = smul.addr %s364, 2
        %s366 = smul.addr %s365, 4
        %s367 = scalar_lea.vmem %s6, %s366
        %p368 = pneg %p174
        %p369 = pneg %p171
        %s370 = sand.u32 %s187, 1
        %s371 = scalar_lea.sflag [#allocation6], %s370
        %s372 = sand.u32 %s187, 1
        %s373 = smul.addr %s372, 128
        %s374 = scalar_lea.vmem [#allocation5], %s373
        %p375 = pneg %p200
        %p376 = pneg %p197
        %p377 = pneg %p221
        %p378 = pneg %p218
        %p379 = pneg %p242
        %p380 = pneg %p239
        %p381 = pneg %p263
        %p382 = pneg %p260
        %s383 = smul.u32 16, %s27
        %p384 = scmp.lt.s32.totalorder %s383, 31
        %s385 = scalar_select %p384, %s383, 31
        %s386 = smul.addr %s385, 2
        %s387 = smul.addr %s386, 4
        %s388 = scalar_lea.vmem %s6, %s387
        %s389 = smul.u32 16, %s27
        %s390 = smul.u32 16, %s27
        %p392 = scmp.eq.s32.totalorder %s27, 0
        // Predicated region
        $region57: #{tpu_custom_call.1} parent=51 // pred_check
          %p393 = pneg %p392
        $region58: #{tpu_custom_call.1} parent=51 // pred_check_branch
          %395 = sbr.rel (%p393) target = $region60
        $region59: #{tpu_custom_call.1} parent=51 // pred_region
          %v396 = vld [vmem:[%s2] sm:$0xf]
          %v397 = vld [vmem:[%s2 + $0x4] sm:$0xf]
          %v398 = vld [vmem:[%s2 + $0x8] sm:$0xf]
          %v399 = vld [vmem:[%s2 + $0xc] sm:$0xf]
          %v400 = vld [vmem:[%s2 + $0x10] sm:$0xf]
          %v401 = vld [vmem:[%s2 + $0x14] sm:$0xf]
          %v402 = vld [vmem:[%s2 + $0x18] sm:$0xf]
          %v403 = vld [vmem:[%s2 + $0x1c] sm:$0xf]
          %v404 = vld [vmem:[%s0] sm:$0xf]
          %v405 = vld [vmem:[%s0 + $0x4] sm:$0xf]
          %v406 = vld [vmem:[%s0 + $0x8] sm:$0xf]
          %v407 = vld [vmem:[%s0 + $0xc] sm:$0xf]
          %v408 = vld [vmem:[%s0 + $0x10] sm:$0xf]
          %v409 = vld [vmem:[%s0 + $0x14] sm:$0xf]
          %v410 = vld [vmem:[%s0 + $0x18] sm:$0xf]
          %v411 = vld [vmem:[%s0 + $0x1c] sm:$0xf]
          %v412 = vld [vmem:[%s0 + $0x20] sm:$0xf]
          %v413 = vld [vmem:[%s0 + $0x24] sm:$0xf]
          %v414 = vld [vmem:[%s0 + $0x28] sm:$0xf]
          %v415 = vld [vmem:[%s0 + $0x2c] sm:$0xf]
          %v416 = vld [vmem:[%s0 + $0x30] sm:$0xf]
          %v417 = vld [vmem:[%s0 + $0x34] sm:$0xf]
          %v418 = vld [vmem:[%s0 + $0x38] sm:$0xf]
          %v419 = vld [vmem:[%s0 + $0x3c] sm:$0xf]
          %v420 = vld [vmem:[%s0 + $0x40] sm:$0xf]
          %v421 = vld [vmem:[%s0 + $0x44] sm:$0xf]
          %v422 = vld [vmem:[%s0 + $0x48] sm:$0xf]
          %v423 = vld [vmem:[%s0 + $0x4c] sm:$0xf]
          %v424 = vld [vmem:[%s0 + $0x50] sm:$0xf]
          %v425 = vld [vmem:[%s0 + $0x54] sm:$0xf]
          %v426 = vld [vmem:[%s0 + $0x58] sm:$0xf]
          %v427 = vld [vmem:[%s0 + $0x5c] sm:$0xf]
          %v428 = vld [vmem:[%s0 + $0x60] sm:$0xf]
          %v429 = vld [vmem:[%s0 + $0x64] sm:$0xf]
          %v430 = vld [vmem:[%s0 + $0x68] sm:$0xf]
          %v431 = vld [vmem:[%s0 + $0x6c] sm:$0xf]
          %v432 = vld [vmem:[%s0 + $0x70] sm:$0xf]
          %v433 = vld [vmem:[%s0 + $0x74] sm:$0xf]
          %v434 = vld [vmem:[%s0 + $0x78] sm:$0xf]
          %v435 = vld [vmem:[%s0 + $0x7c] sm:$0xf]
          %v468 = vunpack.c.l.b16 %v404
          %v469 = vunpack.c.l.b16 %v405
          %v470 = vunpack.c.l.b16 %v406
          %v471 = vunpack.c.l.b16 %v407
          %v472 = vunpack.c.l.b16 %v408
          %v473 = vunpack.c.l.b16 %v409
          %v474 = vunpack.c.l.b16 %v410
          %v475 = vunpack.c.l.b16 %v411
          %v476 = vunpack.c.l.b16 %v412
          %v477 = vunpack.c.l.b16 %v413
          %v478 = vunpack.c.l.b16 %v414
          %v479 = vunpack.c.l.b16 %v415
          %v480 = vunpack.c.l.b16 %v416
          %v481 = vunpack.c.l.b16 %v417
          %v482 = vunpack.c.l.b16 %v418
          %v483 = vunpack.c.l.b16 %v419
          %v484 = vunpack.c.l.b16 %v420
          %v485 = vunpack.c.l.b16 %v421
          %v486 = vunpack.c.l.b16 %v422
          %v487 = vunpack.c.l.b16 %v423
          %v488 = vunpack.c.l.b16 %v424
          %v489 = vunpack.c.l.b16 %v425
          %v490 = vunpack.c.l.b16 %v426
          %v491 = vunpack.c.l.b16 %v427
          %v492 = vunpack.c.l.b16 %v428
          %v493 = vunpack.c.l.b16 %v429
          %v494 = vunpack.c.l.b16 %v430
          %v495 = vunpack.c.l.b16 %v431
          %v496 = vunpack.c.l.b16 %v432
          %v497 = vunpack.c.l.b16 %v433
          %v498 = vunpack.c.l.b16 %v434
          %v499 = vunpack.c.l.b16 %v435
          %v500 = vpack.c.b16 %v469, %v468
          %v501 = vpack.c.b16 %v471, %v470
          %v502 = vpack.c.b16 %v473, %v472
          %v503 = vpack.c.b16 %v475, %v474
          %v504 = vpack.c.b16 %v477, %v476
          %v505 = vpack.c.b16 %v479, %v478
          %v506 = vpack.c.b16 %v481, %v480
          %v507 = vpack.c.b16 %v483, %v482
          %v508 = vpack.c.b16 %v485, %v484
          %v509 = vpack.c.b16 %v487, %v486
          %v510 = vpack.c.b16 %v489, %v488
          %v511 = vpack.c.b16 %v491, %v490
          %v512 = vpack.c.b16 %v493, %v492
          %v513 = vpack.c.b16 %v495, %v494
          %v514 = vpack.c.b16 %v497, %v496
          %v515 = vpack.c.b16 %v499, %v498
          %v524 = vunpack.c.l.b16 %v396
          %v525 = vunpack.c.l.b16 %v397
          %v526 = vunpack.c.l.b16 %v398
          %v527 = vunpack.c.l.b16 %v399
          %v528 = vunpack.c.l.b16 %v400
          %v529 = vunpack.c.l.b16 %v401
          %v530 = vunpack.c.l.b16 %v402
          %v531 = vunpack.c.l.b16 %v403
          %v532 = vpack.c.b16 %v525, %v524
          %v533 = vpack.c.b16 %v527, %v526
          %v534 = vpack.c.b16 %v529, %v528
          %v535 = vpack.c.b16 %v531, %v530
          %vm540 = vcmask 523264
          %v542 = vsel %vm540, %v500, 0
          %v545 = vsel %vm540, %v501, 0
          %v548 = vsel %vm540, %v502, 0
          %v551 = vsel %vm540, %v503, 0
          %v554 = vsel %vm540, %v504, 0
          %v557 = vsel %vm540, %v505, 0
          %v560 = vsel %vm540, %v506, 0
          %v563 = vsel %vm540, %v507, 0
          %v566 = vsel %vm540, %v508, 0
          %v569 = vsel %vm540, %v509, 0
          %v572 = vsel %vm540, %v510, 0
          %v575 = vsel %vm540, %v511, 0
          %v578 = vsel %vm540, %v512, 0
          %v581 = vsel %vm540, %v513, 0
          %v584 = vsel %vm540, %v514, 0
          %v587 = vsel %vm540, %v515, 0
          %589 = vmatpush.bf16.msra.mxu0 0
          %590 = vmatpush.bf16.msra.mxu0 0
          %591 = vmatpush.bf16.msra.mxu0 0
          %592 = vmatpush.bf16.msra.mxu0 0
          %593 = vmatpush.bf16.msra.mxu0 %v535
          %594 = vmatpush.bf16.msra.mxu0 %v534
          %595 = vmatpush.bf16.msra.mxu0 %v533
          %596 = vmatpush.bf16.msra.mxu0 %v532
          %597 = vmatmul.bf16.gmra.mxu0 %v542
          %v598 = vpop.f32.mrf.mxu0
          %v599 = vadd.f32 0.0, %v598
          %v600 = vpop.f32.mrf.mxu0
          %v601 = vadd.f32 0.0, %v600
          %602 = vmatmul.bf16.gmra.mxu0 %v545
          %v603 = vpop.f32.mrf.mxu0
          %v604 = vadd.f32 0.0, %v603
          %v605 = vpop.f32.mrf.mxu0
          %v606 = vadd.f32 0.0, %v605
          %607 = vmatmul.bf16.gmra.mxu0 %v548
          %v608 = vpop.f32.mrf.mxu0
          %v609 = vadd.f32 0.0, %v608
          %v610 = vpop.f32.mrf.mxu0
          %v611 = vadd.f32 0.0, %v610
          %612 = vmatmul.bf16.gmra.mxu0 %v551
          %v613 = vpop.f32.mrf.mxu0
          %v614 = vadd.f32 0.0, %v613
          %v615 = vpop.f32.mrf.mxu0
          %v616 = vadd.f32 0.0, %v615
          %617 = vmatmul.bf16.gmra.mxu0 %v554
          %v618 = vpop.f32.mrf.mxu0
          %v619 = vadd.f32 0.0, %v618
          %v620 = vpop.f32.mrf.mxu0
          %v621 = vadd.f32 0.0, %v620
          %622 = vmatmul.bf16.gmra.mxu0 %v557
          %v623 = vpop.f32.mrf.mxu0
          %v624 = vadd.f32 0.0, %v623
          %v625 = vpop.f32.mrf.mxu0
          %v626 = vadd.f32 0.0, %v625
          %627 = vmatmul.bf16.gmra.mxu0 %v560
          %v628 = vpop.f32.mrf.mxu0
          %v629 = vadd.f32 0.0, %v628
          %v630 = vpop.f32.mrf.mxu0
          %v631 = vadd.f32 0.0, %v630
          %632 = vmatmul.bf16.gmra.mxu0 %v563
          %v633 = vpop.f32.mrf.mxu0
          %v634 = vadd.f32 0.0, %v633
          %v635 = vpop.f32.mrf.mxu0
          %v636 = vadd.f32 0.0, %v635
          %637 = vmatmul.bf16.gmra.mxu0 %v566
          %v638 = vpop.f32.mrf.mxu0
          %v639 = vadd.f32 0.0, %v638
          %v640 = vpop.f32.mrf.mxu0
          %v641 = vadd.f32 0.0, %v640
          %642 = vmatmul.bf16.gmra.mxu0 %v569
          %v643 = vpop.f32.mrf.mxu0
          %v644 = vadd.f32 0.0, %v643
          %v645 = vpop.f32.mrf.mxu0
          %v646 = vadd.f32 0.0, %v645
          %647 = vmatmul.bf16.gmra.mxu0 %v572
          %v648 = vpop.f32.mrf.mxu0
          %v649 = vadd.f32 0.0, %v648
          %v650 = vpop.f32.mrf.mxu0
          %v651 = vadd.f32 0.0, %v650
          %652 = vmatmul.bf16.gmra.mxu0 %v575
          %v653 = vpop.f32.mrf.mxu0
          %v654 = vadd.f32 0.0, %v653
          %v655 = vpop.f32.mrf.mxu0
          %v656 = vadd.f32 0.0, %v655
          %657 = vmatmul.bf16.gmra.mxu0 %v578
          %v658 = vpop.f32.mrf.mxu0
          %v659 = vadd.f32 0.0, %v658
          %v660 = vpop.f32.mrf.mxu0
          %v661 = vadd.f32 0.0, %v660
          %662 = vmatmul.bf16.gmra.mxu0 %v581
          %v663 = vpop.f32.mrf.mxu0
          %v664 = vadd.f32 0.0, %v663
          %v665 = vpop.f32.mrf.mxu0
          %v666 = vadd.f32 0.0, %v665
          %667 = vmatmul.bf16.gmra.mxu0 %v584
          %v668 = vpop.f32.mrf.mxu0
          %v669 = vadd.f32 0.0, %v668
          %v670 = vpop.f32.mrf.mxu0
          %v671 = vadd.f32 0.0, %v670
          %672 = vmatmul.bf16.gmra.mxu0 %v587
          %v673 = vpop.f32.mrf.mxu0
          %v674 = vadd.f32 0.0, %v673
          %v675 = vpop.f32.mrf.mxu0
          %v676 = vadd.f32 0.0, %v675
          %677 = vdwg.mxu0
          %v678 = vpack.c.bf16 %v599, %v599
          %v679 = vpack.c.bf16 %v601, %v601
          %v680 = vpack.c.bf16 %v604, %v604
          %v681 = vpack.c.bf16 %v606, %v606
          %v682 = vpack.c.bf16 %v609, %v609
          %v683 = vpack.c.bf16 %v611, %v611
          %v684 = vpack.c.bf16 %v614, %v614
          %v685 = vpack.c.bf16 %v616, %v616
          %v686 = vpack.c.bf16 %v619, %v619
          %v687 = vpack.c.bf16 %v621, %v621
          %v688 = vpack.c.bf16 %v624, %v624
          %v689 = vpack.c.bf16 %v626, %v626
          %v690 = vpack.c.bf16 %v629, %v629
          %v691 = vpack.c.bf16 %v631, %v631
          %v692 = vpack.c.bf16 %v634, %v634
          %v693 = vpack.c.bf16 %v636, %v636
          %v694 = vpack.c.bf16 %v639, %v639
          %v695 = vpack.c.bf16 %v641, %v641
          %v696 = vpack.c.bf16 %v644, %v644
          %v697 = vpack.c.bf16 %v646, %v646
          %v698 = vpack.c.bf16 %v649, %v649
          %v699 = vpack.c.bf16 %v651, %v651
          %v700 = vpack.c.bf16 %v654, %v654
          %v701 = vpack.c.bf16 %v656, %v656
          %v702 = vpack.c.bf16 %v659, %v659
          %v703 = vpack.c.bf16 %v661, %v661
          %v704 = vpack.c.bf16 %v664, %v664
          %v705 = vpack.c.bf16 %v666, %v666
          %v706 = vpack.c.bf16 %v669, %v669
          %v707 = vpack.c.bf16 %v671, %v671
          %v708 = vpack.c.bf16 %v674, %v674
          %v709 = vpack.c.bf16 %v676, %v676
          %vm710 = vcmask 519168
          %711 = vst.msk [vmem:[%s8] sm:$0xf] %vm710, %v678
          %712 = vst.msk [vmem:[%s8 + $0x4] sm:$0xf] %vm710, %v679
          %713 = vst.msk [vmem:[%s8 + $0x8] sm:$0xf] %vm710, %v680
          %714 = vst.msk [vmem:[%s8 + $0xc] sm:$0xf] %vm710, %v681
          %715 = vst.msk [vmem:[%s8 + $0x10] sm:$0xf] %vm710, %v682
          %716 = vst.msk [vmem:[%s8 + $0x14] sm:$0xf] %vm710, %v683
          %717 = vst.msk [vmem:[%s8 + $0x18] sm:$0xf] %vm710, %v684
          %718 = vst.msk [vmem:[%s8 + $0x1c] sm:$0xf] %vm710, %v685
          %719 = vst.msk [vmem:[%s8 + $0x20] sm:$0xf] %vm710, %v686
          %720 = vst.msk [vmem:[%s8 + $0x24] sm:$0xf] %vm710, %v687
          %721 = vst.msk [vmem:[%s8 + $0x28] sm:$0xf] %vm710, %v688
          %722 = vst.msk [vmem:[%s8 + $0x2c] sm:$0xf] %vm710, %v689
          %723 = vst.msk [vmem:[%s8 + $0x30] sm:$0xf] %vm710, %v690
          %724 = vst.msk [vmem:[%s8 + $0x34] sm:$0xf] %vm710, %v691
          %725 = vst.msk [vmem:[%s8 + $0x38] sm:$0xf] %vm710, %v692
          %726 = vst.msk [vmem:[%s8 + $0x3c] sm:$0xf] %vm710, %v693
          %727 = vst.msk [vmem:[%s8 + $0x40] sm:$0xf] %vm710, %v694
          %728 = vst.msk [vmem:[%s8 + $0x44] sm:$0xf] %vm710, %v695
          %729 = vst.msk [vmem:[%s8 + $0x48] sm:$0xf] %vm710, %v696
          %730 = vst.msk [vmem:[%s8 + $0x4c] sm:$0xf] %vm710, %v697
          %731 = vst.msk [vmem:[%s8 + $0x50] sm:$0xf] %vm710, %v698
          %732 = vst.msk [vmem:[%s8 + $0x54] sm:$0xf] %vm710, %v699
          %733 = vst.msk [vmem:[%s8 + $0x58] sm:$0xf] %vm710, %v700
          %734 = vst.msk [vmem:[%s8 + $0x5c] sm:$0xf] %vm710, %v701
          %735 = vst.msk [vmem:[%s8 + $0x60] sm:$0xf] %vm710, %v702
          %736 = vst.msk [vmem:[%s8 + $0x64] sm:$0xf] %vm710, %v703
          %737 = vst.msk [vmem:[%s8 + $0x68] sm:$0xf] %vm710, %v704
          %738 = vst.msk [vmem:[%s8 + $0x6c] sm:$0xf] %vm710, %v705
          %739 = vst.msk [vmem:[%s8 + $0x70] sm:$0xf] %vm710, %v706
          %740 = vst.msk [vmem:[%s8 + $0x74] sm:$0xf] %vm710, %v707
          %741 = vst.msk [vmem:[%s8 + $0x78] sm:$0xf] %vm710, %v708
          %742 = vst.msk [vmem:[%s8 + $0x7c] sm:$0xf] %vm710, %v709
          %v743 = vld [vmem:[%s1] sm:$0xf]
          %v744 = vld [vmem:[%s1 + $0x4] sm:$0xf]
          %v745 = vld [vmem:[%s1 + $0x8] sm:$0xf]
          %v746 = vld [vmem:[%s1 + $0xc] sm:$0xf]
          %v747 = vld [vmem:[%s1 + $0x10] sm:$0xf]
          %v748 = vld [vmem:[%s1 + $0x14] sm:$0xf]
          %v749 = vld [vmem:[%s1 + $0x18] sm:$0xf]
          %v750 = vld [vmem:[%s1 + $0x1c] sm:$0xf]
          %v751 = vld [vmem:[%s1 + $0x20] sm:$0xf]
          %v752 = vld [vmem:[%s1 + $0x24] sm:$0xf]
          %v753 = vld [vmem:[%s1 + $0x28] sm:$0xf]
          %v754 = vld [vmem:[%s1 + $0x2c] sm:$0xf]
          %v755 = vld [vmem:[%s1 + $0x30] sm:$0xf]
          %v756 = vld [vmem:[%s1 + $0x34] sm:$0xf]
          %v757 = vld [vmem:[%s1 + $0x38] sm:$0xf]
          %v758 = vld [vmem:[%s1 + $0x3c] sm:$0xf]
          %v759 = vld [vmem:[%s1 + $0x40] sm:$0xf]
          %v760 = vld [vmem:[%s1 + $0x44] sm:$0xf]
          %v761 = vld [vmem:[%s1 + $0x48] sm:$0xf]
          %v762 = vld [vmem:[%s1 + $0x4c] sm:$0xf]
          %v763 = vld [vmem:[%s1 + $0x50] sm:$0xf]
          %v764 = vld [vmem:[%s1 + $0x54] sm:$0xf]
          %v765 = vld [vmem:[%s1 + $0x58] sm:$0xf]
          %v766 = vld [vmem:[%s1 + $0x5c] sm:$0xf]
          %v767 = vld [vmem:[%s1 + $0x60] sm:$0xf]
          %v768 = vld [vmem:[%s1 + $0x64] sm:$0xf]
          %v769 = vld [vmem:[%s1 + $0x68] sm:$0xf]
          %v770 = vld [vmem:[%s1 + $0x6c] sm:$0xf]
          %v771 = vld [vmem:[%s1 + $0x70] sm:$0xf]
          %v772 = vld [vmem:[%s1 + $0x74] sm:$0xf]
          %v773 = vld [vmem:[%s1 + $0x78] sm:$0xf]
          %v774 = vld [vmem:[%s1 + $0x7c] sm:$0xf]
          %v807 = vunpack.c.l.b16 %v743
          %v808 = vunpack.c.l.b16 %v744
          %v809 = vunpack.c.l.b16 %v745
          %v810 = vunpack.c.l.b16 %v746
          %v811 = vunpack.c.l.b16 %v747
          %v812 = vunpack.c.l.b16 %v748
          %v813 = vunpack.c.l.b16 %v749
          %v814 = vunpack.c.l.b16 %v750
          %v815 = vunpack.c.l.b16 %v751
          %v816 = vunpack.c.l.b16 %v752
          %v817 = vunpack.c.l.b16 %v753
          %v818 = vunpack.c.l.b16 %v754
          %v819 = vunpack.c.l.b16 %v755
          %v820 = vunpack.c.l.b16 %v756
          %v821 = vunpack.c.l.b16 %v757
          %v822 = vunpack.c.l.b16 %v758
          %v823 = vunpack.c.l.b16 %v759
          %v824 = vunpack.c.l.b16 %v760
          %v825 = vunpack.c.l.b16 %v761
          %v826 = vunpack.c.l.b16 %v762
          %v827 = vunpack.c.l.b16 %v763
          %v828 = vunpack.c.l.b16 %v764
          %v829 = vunpack.c.l.b16 %v765
          %v830 = vunpack.c.l.b16 %v766
          %v831 = vunpack.c.l.b16 %v767
          %v832 = vunpack.c.l.b16 %v768
          %v833 = vunpack.c.l.b16 %v769
          %v834 = vunpack.c.l.b16 %v770
          %v835 = vunpack.c.l.b16 %v771
          %v836 = vunpack.c.l.b16 %v772
          %v837 = vunpack.c.l.b16 %v773
          %v838 = vunpack.c.l.b16 %v774
          %v839 = vpack.c.b16 %v808, %v807
          %v840 = vpack.c.b16 %v810, %v809
          %v841 = vpack.c.b16 %v812, %v811
          %v842 = vpack.c.b16 %v814, %v813
          %v843 = vpack.c.b16 %v816, %v815
          %v844 = vpack.c.b16 %v818, %v817
          %v845 = vpack.c.b16 %v820, %v819
          %v846 = vpack.c.b16 %v822, %v821
          %v847 = vpack.c.b16 %v824, %v823
          %v848 = vpack.c.b16 %v826, %v825
          %v849 = vpack.c.b16 %v828, %v827
          %v850 = vpack.c.b16 %v830, %v829
          %v851 = vpack.c.b16 %v832, %v831
          %v852 = vpack.c.b16 %v834, %v833
          %v853 = vpack.c.b16 %v836, %v835
          %v854 = vpack.c.b16 %v838, %v837
          %v856 = vsel %vm540, %v839, 0
          %v859 = vsel %vm540, %v840, 0
          %v862 = vsel %vm540, %v841, 0
          %v865 = vsel %vm540, %v842, 0
          %v868 = vsel %vm540, %v843, 0
          %v871 = vsel %vm540, %v844, 0
          %v874 = vsel %vm540, %v845, 0
          %v877 = vsel %vm540, %v846, 0
          %v880 = vsel %vm540, %v847, 0
          %v883 = vsel %vm540, %v848, 0
          %v886 = vsel %vm540, %v849, 0
          %v889 = vsel %vm540, %v850, 0
          %v892 = vsel %vm540, %v851, 0
          %v895 = vsel %vm540, %v852, 0
          %v898 = vsel %vm540, %v853, 0
          %v901 = vsel %vm540, %v854, 0
          %903 = vmatpush.bf16.msra.mxu0 0
          %904 = vmatpush.bf16.msra.mxu0 0
          %905 = vmatpush.bf16.msra.mxu0 0
          %906 = vmatpush.bf16.msra.mxu0 0
          %907 = vmatpush.bf16.msra.mxu0 %v535
          %908 = vmatpush.bf16.msra.mxu0 %v534
          %909 = vmatpush.bf16.msra.mxu0 %v533
          %910 = vmatpush.bf16.msra.mxu0 %v532
          %911 = vmatmul.bf16.gmra.mxu0 %v856
          %v912 = vpop.f32.mrf.mxu0
          %v913 = vadd.f32 0.0, %v912
          %v914 = vpop.f32.mrf.mxu0
          %v915 = vadd.f32 0.0, %v914
          %916 = vmatmul.bf16.gmra.mxu0 %v859
          %v917 = vpop.f32.mrf.mxu0
          %v918 = vadd.f32 0.0, %v917
          %v919 = vpop.f32.mrf.mxu0
          %v920 = vadd.f32 0.0, %v919
          %921 = vmatmul.bf16.gmra.mxu0 %v862
          %v922 = vpop.f32.mrf.mxu0
          %v923 = vadd.f32 0.0, %v922
          %v924 = vpop.f32.mrf.mxu0
          %v925 = vadd.f32 0.0, %v924
          %926 = vmatmul.bf16.gmra.mxu0 %v865
          %v927 = vpop.f32.mrf.mxu0
          %v928 = vadd.f32 0.0, %v927
          %v929 = vpop.f32.mrf.mxu0
          %v930 = vadd.f32 0.0, %v929
          %931 = vmatmul.bf16.gmra.mxu0 %v868
          %v932 = vpop.f32.mrf.mxu0
          %v933 = vadd.f32 0.0, %v932
          %v934 = vpop.f32.mrf.mxu0
          %v935 = vadd.f32 0.0, %v934
          %936 = vmatmul.bf16.gmra.mxu0 %v871
          %v937 = vpop.f32.mrf.mxu0
          %v938 = vadd.f32 0.0, %v937
          %v939 = vpop.f32.mrf.mxu0
          %v940 = vadd.f32 0.0, %v939
          %941 = vmatmul.bf16.gmra.mxu0 %v874
          %v942 = vpop.f32.mrf.mxu0
          %v943 = vadd.f32 0.0, %v942
          %v944 = vpop.f32.mrf.mxu0
          %v945 = vadd.f32 0.0, %v944
          %946 = vmatmul.bf16.gmra.mxu0 %v877
          %v947 = vpop.f32.mrf.mxu0
          %v948 = vadd.f32 0.0, %v947
          %v949 = vpop.f32.mrf.mxu0
          %v950 = vadd.f32 0.0, %v949
          %951 = vmatmul.bf16.gmra.mxu0 %v880
          %v952 = vpop.f32.mrf.mxu0
          %v953 = vadd.f32 0.0, %v952
          %v954 = vpop.f32.mrf.mxu0
          %v955 = vadd.f32 0.0, %v954
          %956 = vmatmul.bf16.gmra.mxu0 %v883
          %v957 = vpop.f32.mrf.mxu0
          %v958 = vadd.f32 0.0, %v957
          %v959 = vpop.f32.mrf.mxu0
          %v960 = vadd.f32 0.0, %v959
          %961 = vmatmul.bf16.gmra.mxu0 %v886
          %v962 = vpop.f32.mrf.mxu0
          %v963 = vadd.f32 0.0, %v962
          %v964 = vpop.f32.mrf.mxu0
          %v965 = vadd.f32 0.0, %v964
          %966 = vmatmul.bf16.gmra.mxu0 %v889
          %v967 = vpop.f32.mrf.mxu0
          %v968 = vadd.f32 0.0, %v967
          %v969 = vpop.f32.mrf.mxu0
          %v970 = vadd.f32 0.0, %v969
          %971 = vmatmul.bf16.gmra.mxu0 %v892
          %v972 = vpop.f32.mrf.mxu0
          %v973 = vadd.f32 0.0, %v972
          %v974 = vpop.f32.mrf.mxu0
          %v975 = vadd.f32 0.0, %v974
          %976 = vmatmul.bf16.gmra.mxu0 %v895
          %v977 = vpop.f32.mrf.mxu0
          %v978 = vadd.f32 0.0, %v977
          %v979 = vpop.f32.mrf.mxu0
          %v980 = vadd.f32 0.0, %v979
          %981 = vmatmul.bf16.gmra.mxu0 %v898
          %v982 = vpop.f32.mrf.mxu0
          %v983 = vadd.f32 0.0, %v982
          %v984 = vpop.f32.mrf.mxu0
          %v985 = vadd.f32 0.0, %v984
          %986 = vmatmul.bf16.gmra.mxu0 %v901
          %v987 = vpop.f32.mrf.mxu0
          %v988 = vadd.f32 0.0, %v987
          %v989 = vpop.f32.mrf.mxu0
          %v990 = vadd.f32 0.0, %v989
          %991 = vdwg.mxu0
          %v992 = vpack.c.bf16 %v913, %v913
          %v993 = vpack.c.bf16 %v915, %v915
          %v994 = vpack.c.bf16 %v918, %v918
          %v995 = vpack.c.bf16 %v920, %v920
          %v996 = vpack.c.bf16 %v923, %v923
          %v997 = vpack.c.bf16 %v925, %v925
          %v998 = vpack.c.bf16 %v928, %v928
          %v999 = vpack.c.bf16 %v930, %v930
          %v1000 = vpack.c.bf16 %v933, %v933
          %v1001 = vpack.c.bf16 %v935, %v935
          %v1002 = vpack.c.bf16 %v938, %v938
          %v1003 = vpack.c.bf16 %v940, %v940
          %v1004 = vpack.c.bf16 %v943, %v943
          %v1005 = vpack.c.bf16 %v945, %v945
          %v1006 = vpack.c.bf16 %v948, %v948
          %v1007 = vpack.c.bf16 %v950, %v950
          %v1008 = vpack.c.bf16 %v953, %v953
          %v1009 = vpack.c.bf16 %v955, %v955
          %v1010 = vpack.c.bf16 %v958, %v958
          %v1011 = vpack.c.bf16 %v960, %v960
          %v1012 = vpack.c.bf16 %v963, %v963
          %v1013 = vpack.c.bf16 %v965, %v965
          %v1014 = vpack.c.bf16 %v968, %v968
          %v1015 = vpack.c.bf16 %v970, %v970
          %v1016 = vpack.c.bf16 %v973, %v973
          %v1017 = vpack.c.bf16 %v975, %v975
          %v1018 = vpack.c.bf16 %v978, %v978
          %v1019 = vpack.c.bf16 %v980, %v980
          %v1020 = vpack.c.bf16 %v983, %v983
          %v1021 = vpack.c.bf16 %v985, %v985
          %v1022 = vpack.c.bf16 %v988, %v988
          %v1023 = vpack.c.bf16 %v990, %v990
          %1024 = vst.msk [vmem:[%s9] sm:$0xf] %vm710, %v992
          %1025 = vst.msk [vmem:[%s9 + $0x4] sm:$0xf] %vm710, %v993
          %1026 = vst.msk [vmem:[%s9 + $0x8] sm:$0xf] %vm710, %v994
          %1027 = vst.msk [vmem:[%s9 + $0xc] sm:$0xf] %vm710, %v995
          %1028 = vst.msk [vmem:[%s9 + $0x10] sm:$0xf] %vm710, %v996
          %1029 = vst.msk [vmem:[%s9 + $0x14] sm:$0xf] %vm710, %v997
          %1030 = vst.msk [vmem:[%s9 + $0x18] sm:$0xf] %vm710, %v998
          %1031 = vst.msk [vmem:[%s9 + $0x1c] sm:$0xf] %vm710, %v999
          %1032 = vst.msk [vmem:[%s9 + $0x20] sm:$0xf] %vm710, %v1000
          %1033 = vst.msk [vmem:[%s9 + $0x24] sm:$0xf] %vm710, %v1001
          %1034 = vst.msk [vmem:[%s9 + $0x28] sm:$0xf] %vm710, %v1002
          %1035 = vst.msk [vmem:[%s9 + $0x2c] sm:$0xf] %vm710, %v1003
          %1036 = vst.msk [vmem:[%s9 + $0x30] sm:$0xf] %vm710, %v1004
          %1037 = vst.msk [vmem:[%s9 + $0x34] sm:$0xf] %vm710, %v1005
          %1038 = vst.msk [vmem:[%s9 + $0x38] sm:$0xf] %vm710, %v1006
          %1039 = vst.msk [vmem:[%s9 + $0x3c] sm:$0xf] %vm710, %v1007
          %1040 = vst.msk [vmem:[%s9 + $0x40] sm:$0xf] %vm710, %v1008
          %1041 = vst.msk [vmem:[%s9 + $0x44] sm:$0xf] %vm710, %v1009
          %1042 = vst.msk [vmem:[%s9 + $0x48] sm:$0xf] %vm710, %v1010
          %1043 = vst.msk [vmem:[%s9 + $0x4c] sm:$0xf] %vm710, %v1011
          %1044 = vst.msk [vmem:[%s9 + $0x50] sm:$0xf] %vm710, %v1012
          %1045 = vst.msk [vmem:[%s9 + $0x54] sm:$0xf] %vm710, %v1013
          %1046 = vst.msk [vmem:[%s9 + $0x58] sm:$0xf] %vm710, %v1014
          %1047 = vst.msk [vmem:[%s9 + $0x5c] sm:$0xf] %vm710, %v1015
          %1048 = vst.msk [vmem:[%s9 + $0x60] sm:$0xf] %vm710, %v1016
          %1049 = vst.msk [vmem:[%s9 + $0x64] sm:$0xf] %vm710, %v1017
          %1050 = vst.msk [vmem:[%s9 + $0x68] sm:$0xf] %vm710, %v1018
          %1051 = vst.msk [vmem:[%s9 + $0x6c] sm:$0xf] %vm710, %v1019
          %1052 = vst.msk [vmem:[%s9 + $0x70] sm:$0xf] %vm710, %v1020
          %1053 = vst.msk [vmem:[%s9 + $0x74] sm:$0xf] %vm710, %v1021
          %1054 = vst.msk [vmem:[%s9 + $0x78] sm:$0xf] %vm710, %v1022
          %1055 = vst.msk [vmem:[%s9 + $0x7c] sm:$0xf] %vm710, %v1023
          %vm1056 = vcmask 516096
          %1057 = vst.msk [vmem:[#allocation2] sm:$0x1] %vm1056, 0.0
          %1058 = vst.msk [vmem:[#allocation3] sm:$0x1] %vm1056, 0.0
        $region60: #{tpu_custom_call.1} parent=51 // pred_fallthru
          _
        %v1059 = vld [vmem:[%s3] sm:$0x1]
        %s1060 = sld [smem:[#allocation4]]
        %v1061 = vld [vmem:[%s8] sm:$0xf]
        %v1062 = vld [vmem:[%s8 + $0x4] sm:$0xf]
        %v1063 = vld [vmem:[%s8 + $0x8] sm:$0xf]
        %v1064 = vld [vmem:[%s8 + $0xc] sm:$0xf]
        %v1065 = vld [vmem:[%s8 + $0x10] sm:$0xf]
        %v1066 = vld [vmem:[%s8 + $0x14] sm:$0xf]
        %v1067 = vld [vmem:[%s8 + $0x18] sm:$0xf]
        %v1068 = vld [vmem:[%s8 + $0x1c] sm:$0xf]
        %v1069 = vld [vmem:[%s8 + $0x20] sm:$0xf]
        %v1070 = vld [vmem:[%s8 + $0x24] sm:$0xf]
        %v1071 = vld [vmem:[%s8 + $0x28] sm:$0xf]
        %v1072 = vld [vmem:[%s8 + $0x2c] sm:$0xf]
        %v1073 = vld [vmem:[%s8 + $0x30] sm:$0xf]
        %v1074 = vld [vmem:[%s8 + $0x34] sm:$0xf]
        %v1075 = vld [vmem:[%s8 + $0x38] sm:$0xf]
        %v1076 = vld [vmem:[%s8 + $0x3c] sm:$0xf]
        %v1077 = vld [vmem:[%s8 + $0x40] sm:$0xf]
        %v1078 = vld [vmem:[%s8 + $0x44] sm:$0xf]
        %v1079 = vld [vmem:[%s8 + $0x48] sm:$0xf]
        %v1080 = vld [vmem:[%s8 + $0x4c] sm:$0xf]
        %v1081 = vld [vmem:[%s8 + $0x50] sm:$0xf]
        %v1082 = vld [vmem:[%s8 + $0x54] sm:$0xf]
        %v1083 = vld [vmem:[%s8 + $0x58] sm:$0xf]
        %v1084 = vld [vmem:[%s8 + $0x5c] sm:$0xf]
        %v1085 = vld [vmem:[%s8 + $0x60] sm:$0xf]
        %v1086 = vld [vmem:[%s8 + $0x64] sm:$0xf]
        %v1087 = vld [vmem:[%s8 + $0x68] sm:$0xf]
        %v1088 = vld [vmem:[%s8 + $0x6c] sm:$0xf]
        %v1089 = vld [vmem:[%s8 + $0x70] sm:$0xf]
        %v1090 = vld [vmem:[%s8 + $0x74] sm:$0xf]
        %v1091 = vld [vmem:[%s8 + $0x78] sm:$0xf]
        %v1092 = vld [vmem:[%s8 + $0x7c] sm:$0xf]
        %v1093 = vld [vmem:[%s388] sm:$0xff]
        %v1094 = vld [vmem:[%s388 + $0x8] sm:$0xff]
        %v1095 = vld [vmem:[%s388 + $0x10] sm:$0xff]
        %v1096 = vld [vmem:[%s388 + $0x18] sm:$0xff]
        %v1097 = vld [vmem:[%s388 + $0x20] sm:$0xff]
        %v1098 = vld [vmem:[%s388 + $0x28] sm:$0xff]
        %v1099 = vld [vmem:[%s388 + $0x30] sm:$0xff]
        %v1100 = vld [vmem:[%s388 + $0x38] sm:$0xff]
        %v1101 = vld [vmem:[%s388 + $0x40] sm:$0xff]
        %v1102 = vld [vmem:[%s388 + $0x48] sm:$0xff]
        %v1103 = vld [vmem:[%s388 + $0x50] sm:$0xff]
        %v1104 = vld [vmem:[%s388 + $0x58] sm:$0xff]
        %v1105 = vld [vmem:[%s388 + $0x60] sm:$0xff]
        %v1106 = vld [vmem:[%s388 + $0x68] sm:$0xff]
        %v1107 = vld [vmem:[%s388 + $0x70] sm:$0xff]
        %v1108 = vld [vmem:[%s388 + $0x78] sm:$0xff]
        %v1110 = vperm.slane %v1059, 0
        %v1128 = vunpack.c.l.b16 %v1093
        %v1129 = vunpack.c.h.b16 %v1093
        %v1130 = vunpack.c.l.b16 %v1094
        %v1131 = vunpack.c.h.b16 %v1094
        %v1132 = vunpack.c.l.b16 %v1095
        %v1133 = vunpack.c.h.b16 %v1095
        %v1134 = vunpack.c.l.b16 %v1096
        %v1135 = vunpack.c.h.b16 %v1096
        %v1136 = vunpack.c.l.b16 %v1097
        %v1137 = vunpack.c.h.b16 %v1097
        %v1138 = vunpack.c.l.b16 %v1098
        %v1139 = vunpack.c.h.b16 %v1098
        %v1140 = vunpack.c.l.b16 %v1099
        %v1141 = vunpack.c.h.b16 %v1099
        %v1142 = vunpack.c.l.b16 %v1100
        %v1143 = vunpack.c.h.b16 %v1100
        %v1144 = vunpack.c.l.b16 %v1101
        %v1145 = vunpack.c.h.b16 %v1101
        %v1146 = vunpack.c.l.b16 %v1102
        %v1147 = vunpack.c.h.b16 %v1102
        %v1148 = vunpack.c.l.b16 %v1103
        %v1149 = vunpack.c.h.b16 %v1103
        %v1150 = vunpack.c.l.b16 %v1104
        %v1151 = vunpack.c.h.b16 %v1104
        %v1152 = vunpack.c.l.b16 %v1105
        %v1153 = vunpack.c.h.b16 %v1105
        %v1154 = vunpack.c.l.b16 %v1106
        %v1155 = vunpack.c.h.b16 %v1106
        %v1156 = vunpack.c.l.b16 %v1107
        %v1157 = vunpack.c.h.b16 %v1107
        %v1158 = vunpack.c.l.b16 %v1108
        %v1159 = vunpack.c.h.b16 %v1108
        %v1160 = vpack.c.b16 %v1130, %v1128
        %v1161 = vpack.c.b16 %v1131, %v1129
        %v1162 = vpack.c.b16 %v1134, %v1132
        %v1163 = vpack.c.b16 %v1135, %v1133
        %v1164 = vpack.c.b16 %v1138, %v1136
        %v1165 = vpack.c.b16 %v1139, %v1137
        %v1166 = vpack.c.b16 %v1142, %v1140
        %v1167 = vpack.c.b16 %v1143, %v1141
        %v1168 = vpack.c.b16 %v1146, %v1144
        %v1169 = vpack.c.b16 %v1147, %v1145
        %v1170 = vpack.c.b16 %v1150, %v1148
        %v1171 = vpack.c.b16 %v1151, %v1149
        %v1172 = vpack.c.b16 %v1154, %v1152
        %v1173 = vpack.c.b16 %v1155, %v1153
        %v1174 = vpack.c.b16 %v1158, %v1156
        %v1175 = vpack.c.b16 %v1159, %v1157
        %v1224 = vunpack.c.l.b16 %v1061
        %v1225 = vunpack.c.l.b16 %v1062
        %v1226 = vunpack.c.l.b16 %v1063
        %v1227 = vunpack.c.l.b16 %v1064
        %v1228 = vunpack.c.l.b16 %v1065
        %v1229 = vunpack.c.l.b16 %v1066
        %v1230 = vunpack.c.l.b16 %v1067
        %v1231 = vunpack.c.l.b16 %v1068
        %v1232 = vunpack.c.l.b16 %v1069
        %v1233 = vunpack.c.l.b16 %v1070
        %v1234 = vunpack.c.l.b16 %v1071
        %v1235 = vunpack.c.l.b16 %v1072
        %v1236 = vunpack.c.l.b16 %v1073
        %v1237 = vunpack.c.l.b16 %v1074
        %v1238 = vunpack.c.l.b16 %v1075
        %v1239 = vunpack.c.l.b16 %v1076
        %v1240 = vunpack.c.l.b16 %v1077
        %v1241 = vunpack.c.l.b16 %v1078
        %v1242 = vunpack.c.l.b16 %v1079
        %v1243 = vunpack.c.l.b16 %v1080
        %v1244 = vunpack.c.l.b16 %v1081
        %v1245 = vunpack.c.l.b16 %v1082
        %v1246 = vunpack.c.l.b16 %v1083
        %v1247 = vunpack.c.l.b16 %v1084
        %v1248 = vunpack.c.l.b16 %v1085
        %v1249 = vunpack.c.l.b16 %v1086
        %v1250 = vunpack.c.l.b16 %v1087
        %v1251 = vunpack.c.l.b16 %v1088
        %v1252 = vunpack.c.l.b16 %v1089
        %v1253 = vunpack.c.l.b16 %v1090
        %v1254 = vunpack.c.l.b16 %v1091
        %v1255 = vunpack.c.l.b16 %v1092
        %v1256 = vpack.c.b16 %v1225, %v1224
        %v1257 = vpack.c.b16 %v1227, %v1226
        %v1258 = vpack.c.b16 %v1229, %v1228
        %v1259 = vpack.c.b16 %v1231, %v1230
        %v1260 = vpack.c.b16 %v1233, %v1232
        %v1261 = vpack.c.b16 %v1235, %v1234
        %v1262 = vpack.c.b16 %v1237, %v1236
        %v1263 = vpack.c.b16 %v1239, %v1238
        %v1264 = vpack.c.b16 %v1241, %v1240
        %v1265 = vpack.c.b16 %v1243, %v1242
        %v1266 = vpack.c.b16 %v1245, %v1244
        %v1267 = vpack.c.b16 %v1247, %v1246
        %v1268 = vpack.c.b16 %v1249, %v1248
        %v1269 = vpack.c.b16 %v1251, %v1250
        %v1270 = vpack.c.b16 %v1253, %v1252
        %v1271 = vpack.c.b16 %v1255, %v1254
        %1288 = vmatpush.bf16.msra.mxu0 %v1263
        %1289 = vmatpush.bf16.msra.mxu0 %v1262
        %1290 = vmatpush.bf16.msra.mxu0 %v1261
        %1291 = vmatpush.bf16.msra.mxu0 %v1260
        %1292 = vmatpush.bf16.msra.mxu0 %v1259
        %1293 = vmatpush.bf16.msra.mxu0 %v1258
        %1294 = vmatpush.bf16.msra.mxu0 %v1257
        %1295 = vmatpush.bf16.msra.mxu0 %v1256
        %1296 = vmatmul.bf16.gmra.mxu0 %v1160
        %v1297 = vpop.f32.mrf.mxu0
        %v1298 = vadd.f32 %v1110, %v1297
        %v1299 = vpop.f32.mrf.mxu0
        %v1300 = vadd.f32 %v1110, %v1299
        %1301 = vmatmul.bf16.gmra.mxu0 %v1162
        %v1302 = vpop.f32.mrf.mxu0
        %v1303 = vadd.f32 %v1110, %v1302
        %v1304 = vpop.f32.mrf.mxu0
        %v1305 = vadd.f32 %v1110, %v1304
        %1306 = vmatmul.bf16.gmra.mxu0 %v1164
        %v1307 = vpop.f32.mrf.mxu0
        %v1308 = vadd.f32 %v1110, %v1307
        %v1309 = vpop.f32.mrf.mxu0
        %v1310 = vadd.f32 %v1110, %v1309
        %1311 = vmatmul.bf16.gmra.mxu0 %v1166
        %v1312 = vpop.f32.mrf.mxu0
        %v1313 = vadd.f32 %v1110, %v1312
        %v1314 = vpop.f32.mrf.mxu0
        %v1315 = vadd.f32 %v1110, %v1314
        %1316 = vmatmul.bf16.gmra.mxu0 %v1168
        %v1317 = vpop.f32.mrf.mxu0
        %v1318 = vadd.f32 %v1110, %v1317
        %v1319 = vpop.f32.mrf.mxu0
        %v1320 = vadd.f32 %v1110, %v1319
        %1321 = vmatmul.bf16.gmra.mxu0 %v1170
        %v1322 = vpop.f32.mrf.mxu0
        %v1323 = vadd.f32 %v1110, %v1322
        %v1324 = vpop.f32.mrf.mxu0
        %v1325 = vadd.f32 %v1110, %v1324
        %1326 = vmatmul.bf16.gmra.mxu0 %v1172
        %v1327 = vpop.f32.mrf.mxu0
        %v1328 = vadd.f32 %v1110, %v1327
        %v1329 = vpop.f32.mrf.mxu0
        %v1330 = vadd.f32 %v1110, %v1329
        %1331 = vmatmul.bf16.gmra.mxu0 %v1174
        %v1332 = vpop.f32.mrf.mxu0
        %v1333 = vadd.f32 %v1110, %v1332
        %v1334 = vpop.f32.mrf.mxu0
        %v1335 = vadd.f32 %v1110, %v1334
        %1336 = vdwg.mxu0
        %1337 = vmatpush.bf16.msra.mxu0 %v1271
        %1338 = vmatpush.bf16.msra.mxu0 %v1270
        %1339 = vmatpush.bf16.msra.mxu0 %v1269
        %1340 = vmatpush.bf16.msra.mxu0 %v1268
        %1341 = vmatpush.bf16.msra.mxu0 %v1267
        %1342 = vmatpush.bf16.msra.mxu0 %v1266
        %1343 = vmatpush.bf16.msra.mxu0 %v1265
        %1344 = vmatpush.bf16.msra.mxu0 %v1264
        %1345 = vmatmul.bf16.gmra.mxu0 %v1161
        %v1346 = vpop.f32.mrf.mxu0
        %v1347 = vadd.f32 %v1298, %v1346
        %v1348 = vpop.f32.mrf.mxu0
        %v1349 = vadd.f32 %v1300, %v1348
        %1350 = vmatmul.bf16.gmra.mxu0 %v1163
        %v1351 = vpop.f32.mrf.mxu0
        %v1352 = vadd.f32 %v1303, %v1351
        %v1353 = vpop.f32.mrf.mxu0
        %v1354 = vadd.f32 %v1305, %v1353
        %1355 = vmatmul.bf16.gmra.mxu0 %v1165
        %v1356 = vpop.f32.mrf.mxu0
        %v1357 = vadd.f32 %v1308, %v1356
        %v1358 = vpop.f32.mrf.mxu0
        %v1359 = vadd.f32 %v1310, %v1358
        %1360 = vmatmul.bf16.gmra.mxu0 %v1167
        %v1361 = vpop.f32.mrf.mxu0
        %v1362 = vadd.f32 %v1313, %v1361
        %v1363 = vpop.f32.mrf.mxu0
        %v1364 = vadd.f32 %v1315, %v1363
        %1365 = vmatmul.bf16.gmra.mxu0 %v1169
        %v1366 = vpop.f32.mrf.mxu0
        %v1367 = vadd.f32 %v1318, %v1366
        %v1368 = vpop.f32.mrf.mxu0
        %v1369 = vadd.f32 %v1320, %v1368
        %1370 = vmatmul.bf16.gmra.mxu0 %v1171
        %v1371 = vpop.f32.mrf.mxu0
        %v1372 = vadd.f32 %v1323, %v1371
        %v1373 = vpop.f32.mrf.mxu0
        %v1374 = vadd.f32 %v1325, %v1373
        %1375 = vmatmul.bf16.gmra.mxu0 %v1173
        %v1376 = vpop.f32.mrf.mxu0
        %v1377 = vadd.f32 %v1328, %v1376
        %v1378 = vpop.f32.mrf.mxu0
        %v1379 = vadd.f32 %v1330, %v1378
        %1380 = vmatmul.bf16.gmra.mxu0 %v1175
        %v1381 = vpop.f32.mrf.mxu0
        %v1382 = vadd.f32 %v1333, %v1381
        %v1383 = vpop.f32.mrf.mxu0
        %v1384 = vadd.f32 %v1335, %v1383
        %1385 = vdwg.mxu0
        %vm1386 = vcmp.gt.f32.partialorder %v1347, 0.0
        %vm1387 = vcmp.gt.f32.partialorder %v1349, 0.0
        %vm1388 = vcmp.gt.f32.partialorder %v1352, 0.0
        %vm1389 = vcmp.gt.f32.partialorder %v1354, 0.0
        %vm1390 = vcmp.gt.f32.partialorder %v1357, 0.0
        %vm1391 = vcmp.gt.f32.partialorder %v1359, 0.0
        %vm1392 = vcmp.gt.f32.partialorder %v1362, 0.0
        %vm1393 = vcmp.gt.f32.partialorder %v1364, 0.0
        %vm1394 = vcmp.gt.f32.partialorder %v1367, 0.0
        %vm1395 = vcmp.gt.f32.partialorder %v1369, 0.0
        %vm1396 = vcmp.gt.f32.partialorder %v1372, 0.0
        %vm1397 = vcmp.gt.f32.partialorder %v1374, 0.0
        %vm1398 = vcmp.gt.f32.partialorder %v1377, 0.0
        %vm1399 = vcmp.gt.f32.partialorder %v1379, 0.0
        %vm1400 = vcmp.gt.f32.partialorder %v1382, 0.0
        %vm1401 = vcmp.gt.f32.partialorder %v1384, 0.0
        %v1402 = vstv %s1060
        %v1403 = vmul.f32 %v1402, %v1347
        %v1404 = vmul.f32 %v1402, %v1349
        %v1405 = vmul.f32 %v1402, %v1352
        %v1406 = vmul.f32 %v1402, %v1354
        %v1407 = vmul.f32 %v1402, %v1357
        %v1408 = vmul.f32 %v1402, %v1359
        %v1409 = vmul.f32 %v1402, %v1362
        %v1410 = vmul.f32 %v1402, %v1364
        %v1411 = vmul.f32 %v1402, %v1367
        %v1412 = vmul.f32 %v1402, %v1369
        %v1413 = vmul.f32 %v1402, %v1372
        %v1414 = vmul.f32 %v1402, %v1374
        %v1415 = vmul.f32 %v1402, %v1377
        %v1416 = vmul.f32 %v1402, %v1379
        %v1417 = vmul.f32 %v1402, %v1382
        %v1418 = vmul.f32 %v1402, %v1384
        %v1419 = vsel %vm1386, %v1347, %v1403
        %v1420 = vsel %vm1387, %v1349, %v1404
        %v1421 = vsel %vm1388, %v1352, %v1405
        %v1422 = vsel %vm1389, %v1354, %v1406
        %v1423 = vsel %vm1390, %v1357, %v1407
        %v1424 = vsel %vm1391, %v1359, %v1408
        %v1425 = vsel %vm1392, %v1362, %v1409
        %v1426 = vsel %vm1393, %v1364, %v1410
        %v1427 = vsel %vm1394, %v1367, %v1411
        %v1428 = vsel %vm1395, %v1369, %v1412
        %v1429 = vsel %vm1396, %v1372, %v1413
        %v1430 = vsel %vm1397, %v1374, %v1414
        %v1431 = vsel %vm1398, %v1377, %v1415
        %v1432 = vsel %vm1399, %v1379, %v1416
        %v1433 = vsel %vm1400, %v1382, %v1417
        %v1434 = vsel %vm1401, %v1384, %v1418
        %v1435 = vld [vmem:[%s344] sm:$0xff]
        %v1436 = vld [vmem:[%s344 + $0x8] sm:$0xff]
        %v1437 = vld [vmem:[%s344 + $0x10] sm:$0xff]
        %v1438 = vld [vmem:[%s344 + $0x18] sm:$0xff]
        %v1439 = vld [vmem:[%s344 + $0x20] sm:$0xff]
        %v1440 = vld [vmem:[%s344 + $0x28] sm:$0xff]
        %v1441 = vld [vmem:[%s344 + $0x30] sm:$0xff]
        %v1442 = vld [vmem:[%s344 + $0x38] sm:$0xff]
        %v1443 = vld [vmem:[%s344 + $0x40] sm:$0xff]
        %v1444 = vld [vmem:[%s344 + $0x48] sm:$0xff]
        %v1445 = vld [vmem:[%s344 + $0x50] sm:$0xff]
        %v1446 = vld [vmem:[%s344 + $0x58] sm:$0xff]
        %v1447 = vld [vmem:[%s344 + $0x60] sm:$0xff]
        %v1448 = vld [vmem:[%s344 + $0x68] sm:$0xff]
        %v1449 = vld [vmem:[%s344 + $0x70] sm:$0xff]
        %v1450 = vld [vmem:[%s344 + $0x78] sm:$0xff]
        %v1467 = vunpack.c.l.b16 %v1435
        %v1468 = vunpack.c.h.b16 %v1435
        %v1469 = vunpack.c.l.b16 %v1436
        %v1470 = vunpack.c.h.b16 %v1436
        %v1471 = vunpack.c.l.b16 %v1437
        %v1472 = vunpack.c.h.b16 %v1437
        %v1473 = vunpack.c.l.b16 %v1438
        %v1474 = vunpack.c.h.b16 %v1438
        %v1475 = vunpack.c.l.b16 %v1439
        %v1476 = vunpack.c.h.b16 %v1439
        %v1477 = vunpack.c.l.b16 %v1440
        %v1478 = vunpack.c.h.b16 %v1440
        %v1479 = vunpack.c.l.b16 %v1441
        %v1480 = vunpack.c.h.b16 %v1441
        %v1481 = vunpack.c.l.b16 %v1442
        %v1482 = vunpack.c.h.b16 %v1442
        %v1483 = vunpack.c.l.b16 %v1443
        %v1484 = vunpack.c.h.b16 %v1443
        %v1485 = vunpack.c.l.b16 %v1444
        %v1486 = vunpack.c.h.b16 %v1444
        %v1487 = vunpack.c.l.b16 %v1445
        %v1488 = vunpack.c.h.b16 %v1445
        %v1489 = vunpack.c.l.b16 %v1446
        %v1490 = vunpack.c.h.b16 %v1446
        %v1491 = vunpack.c.l.b16 %v1447
        %v1492 = vunpack.c.h.b16 %v1447
        %v1493 = vunpack.c.l.b16 %v1448
        %v1494 = vunpack.c.h.b16 %v1448
        %v1495 = vunpack.c.l.b16 %v1449
        %v1496 = vunpack.c.h.b16 %v1449
        %v1497 = vunpack.c.l.b16 %v1450
        %v1498 = vunpack.c.h.b16 %v1450
        %v1499 = vpack.c.b16 %v1469, %v1467
        %v1500 = vpack.c.b16 %v1470, %v1468
        %v1501 = vpack.c.b16 %v1473, %v1471
        %v1502 = vpack.c.b16 %v1474, %v1472
        %v1503 = vpack.c.b16 %v1477, %v1475
        %v1504 = vpack.c.b16 %v1478, %v1476
        %v1505 = vpack.c.b16 %v1481, %v1479
        %v1506 = vpack.c.b16 %v1482, %v1480
        %v1507 = vpack.c.b16 %v1485, %v1483
        %v1508 = vpack.c.b16 %v1486, %v1484
        %v1509 = vpack.c.b16 %v1489, %v1487
        %v1510 = vpack.c.b16 %v1490, %v1488
        %v1511 = vpack.c.b16 %v1493, %v1491
        %v1512 = vpack.c.b16 %v1494, %v1492
        %v1513 = vpack.c.b16 %v1497, %v1495
        %v1514 = vpack.c.b16 %v1498, %v1496
        %1531 = vmatpush.bf16.msra.mxu0 %v1263
        %1532 = vmatpush.bf16.msra.mxu0 %v1262
        %1533 = vmatpush.bf16.msra.mxu0 %v1261
        %1534 = vmatpush.bf16.msra.mxu0 %v1260
        %1535 = vmatpush.bf16.msra.mxu0 %v1259
        %1536 = vmatpush.bf16.msra.mxu0 %v1258
        %1537 = vmatpush.bf16.msra.mxu0 %v1257
        %1538 = vmatpush.bf16.msra.mxu0 %v1256
        %1539 = vmatmul.bf16.gmra.mxu0 %v1499
        %v1540 = vpop.f32.mrf.mxu0
        %v1541 = vadd.f32 %v1110, %v1540
        %v1542 = vpop.f32.mrf.mxu0
        %v1543 = vadd.f32 %v1110, %v1542
        %1544 = vmatmul.bf16.gmra.mxu0 %v1501
        %v1545 = vpop.f32.mrf.mxu0
        %v1546 = vadd.f32 %v1110, %v1545
        %v1547 = vpop.f32.mrf.mxu0
        %v1548 = vadd.f32 %v1110, %v1547
        %1549 = vmatmul.bf16.gmra.mxu0 %v1503
        %v1550 = vpop.f32.mrf.mxu0
        %v1551 = vadd.f32 %v1110, %v1550
        %v1552 = vpop.f32.mrf.mxu0
        %v1553 = vadd.f32 %v1110, %v1552
        %1554 = vmatmul.bf16.gmra.mxu0 %v1505
        %v1555 = vpop.f32.mrf.mxu0
        %v1556 = vadd.f32 %v1110, %v1555
        %v1557 = vpop.f32.mrf.mxu0
        %v1558 = vadd.f32 %v1110, %v1557
        %1559 = vmatmul.bf16.gmra.mxu0 %v1507
        %v1560 = vpop.f32.mrf.mxu0
        %v1561 = vadd.f32 %v1110, %v1560
        %v1562 = vpop.f32.mrf.mxu0
        %v1563 = vadd.f32 %v1110, %v1562
        %1564 = vmatmul.bf16.gmra.mxu0 %v1509
        %v1565 = vpop.f32.mrf.mxu0
        %v1566 = vadd.f32 %v1110, %v1565
        %v1567 = vpop.f32.mrf.mxu0
        %v1568 = vadd.f32 %v1110, %v1567
        %1569 = vmatmul.bf16.gmra.mxu0 %v1511
        %v1570 = vpop.f32.mrf.mxu0
        %v1571 = vadd.f32 %v1110, %v1570
        %v1572 = vpop.f32.mrf.mxu0
        %v1573 = vadd.f32 %v1110, %v1572
        %1574 = vmatmul.bf16.gmra.mxu0 %v1513
        %v1575 = vpop.f32.mrf.mxu0
        %v1576 = vadd.f32 %v1110, %v1575
        %v1577 = vpop.f32.mrf.mxu0
        %v1578 = vadd.f32 %v1110, %v1577
        %1579 = vdwg.mxu0
        %1580 = vmatpush.bf16.msra.mxu0 %v1271
        %1581 = vmatpush.bf16.msra.mxu0 %v1270
        %1582 = vmatpush.bf16.msra.mxu0 %v1269
        %1583 = vmatpush.bf16.msra.mxu0 %v1268
        %1584 = vmatpush.bf16.msra.mxu0 %v1267
        %1585 = vmatpush.bf16.msra.mxu0 %v1266
        %1586 = vmatpush.bf16.msra.mxu0 %v1265
        %1587 = vmatpush.bf16.msra.mxu0 %v1264
        %1588 = vmatmul.bf16.gmra.mxu0 %v1500
        %v1589 = vpop.f32.mrf.mxu0
        %v1590 = vadd.f32 %v1541, %v1589
        %v1591 = vpop.f32.mrf.mxu0
        %v1592 = vadd.f32 %v1543, %v1591
        %1593 = vmatmul.bf16.gmra.mxu0 %v1502
        %v1594 = vpop.f32.mrf.mxu0
        %v1595 = vadd.f32 %v1546, %v1594
        %v1596 = vpop.f32.mrf.mxu0
        %v1597 = vadd.f32 %v1548, %v1596
        %1598 = vmatmul.bf16.gmra.mxu0 %v1504
        %v1599 = vpop.f32.mrf.mxu0
        %v1600 = vadd.f32 %v1551, %v1599
        %v1601 = vpop.f32.mrf.mxu0
        %v1602 = vadd.f32 %v1553, %v1601
        %1603 = vmatmul.bf16.gmra.mxu0 %v1506
        %v1604 = vpop.f32.mrf.mxu0
        %v1605 = vadd.f32 %v1556, %v1604
        %v1606 = vpop.f32.mrf.mxu0
        %v1607 = vadd.f32 %v1558, %v1606
        %1608 = vmatmul.bf16.gmra.mxu0 %v1508
        %v1609 = vpop.f32.mrf.mxu0
        %v1610 = vadd.f32 %v1561, %v1609
        %v1611 = vpop.f32.mrf.mxu0
        %v1612 = vadd.f32 %v1563, %v1611
        %1613 = vmatmul.bf16.gmra.mxu0 %v1510
        %v1614 = vpop.f32.mrf.mxu0
        %v1615 = vadd.f32 %v1566, %v1614
        %v1616 = vpop.f32.mrf.mxu0
        %v1617 = vadd.f32 %v1568, %v1616
        %1618 = vmatmul.bf16.gmra.mxu0 %v1512
        %v1619 = vpop.f32.mrf.mxu0
        %v1620 = vadd.f32 %v1571, %v1619
        %v1621 = vpop.f32.mrf.mxu0
        %v1622 = vadd.f32 %v1573, %v1621
        %1623 = vmatmul.bf16.gmra.mxu0 %v1514
        %v1624 = vpop.f32.mrf.mxu0
        %v1625 = vadd.f32 %v1576, %v1624
        %v1626 = vpop.f32.mrf.mxu0
        %v1627 = vadd.f32 %v1578, %v1626
        %1628 = vdwg.mxu0
        %vm1629 = vcmp.gt.f32.partialorder %v1590, 0.0
        %vm1630 = vcmp.gt.f32.partialorder %v1592, 0.0
        %vm1631 = vcmp.gt.f32.partialorder %v1595, 0.0
        %vm1632 = vcmp.gt.f32.partialorder %v1597, 0.0
        %vm1633 = vcmp.gt.f32.partialorder %v1600, 0.0
        %vm1634 = vcmp.gt.f32.partialorder %v1602, 0.0
        %vm1635 = vcmp.gt.f32.partialorder %v1605, 0.0
        %vm1636 = vcmp.gt.f32.partialorder %v1607, 0.0
        %vm1637 = vcmp.gt.f32.partialorder %v1610, 0.0
        %vm1638 = vcmp.gt.f32.partialorder %v1612, 0.0
        %vm1639 = vcmp.gt.f32.partialorder %v1615, 0.0
        %vm1640 = vcmp.gt.f32.partialorder %v1617, 0.0
        %vm1641 = vcmp.gt.f32.partialorder %v1620, 0.0
        %vm1642 = vcmp.gt.f32.partialorder %v1622, 0.0
        %vm1643 = vcmp.gt.f32.partialorder %v1625, 0.0
        %vm1644 = vcmp.gt.f32.partialorder %v1627, 0.0
        %v1645 = vmul.f32 %v1402, %v1590
        %v1646 = vmul.f32 %v1402, %v1592
        %v1647 = vmul.f32 %v1402, %v1595
        %v1648 = vmul.f32 %v1402, %v1597
        %v1649 = vmul.f32 %v1402, %v1600
        %v1650 = vmul.f32 %v1402, %v1602
        %v1651 = vmul.f32 %v1402, %v1605
        %v1652 = vmul.f32 %v1402, %v1607
        %v1653 = vmul.f32 %v1402, %v1610
        %v1654 = vmul.f32 %v1402, %v1612
        %v1655 = vmul.f32 %v1402, %v1615
        %v1656 = vmul.f32 %v1402, %v1617
        %v1657 = vmul.f32 %v1402, %v1620
        %v1658 = vmul.f32 %v1402, %v1622
        %v1659 = vmul.f32 %v1402, %v1625
        %v1660 = vmul.f32 %v1402, %v1627
        %v1661 = vsel %vm1629, %v1590, %v1645
        %v1662 = vsel %vm1630, %v1592, %v1646
        %v1663 = vsel %vm1631, %v1595, %v1647
        %v1664 = vsel %vm1632, %v1597, %v1648
        %v1665 = vsel %vm1633, %v1600, %v1649
        %v1666 = vsel %vm1634, %v1602, %v1650
        %v1667 = vsel %vm1635, %v1605, %v1651
        %v1668 = vsel %vm1636, %v1607, %v1652
        %v1669 = vsel %vm1637, %v1610, %v1653
        %v1670 = vsel %vm1638, %v1612, %v1654
        %v1671 = vsel %vm1639, %v1615, %v1655
        %v1672 = vsel %vm1640, %v1617, %v1656
        %v1673 = vsel %vm1641, %v1620, %v1657
        %v1674 = vsel %vm1642, %v1622, %v1658
        %v1675 = vsel %vm1643, %v1625, %v1659
        %v1676 = vsel %vm1644, %v1627, %v1660
        %v1677 = vld [vmem:[#allocation2] sm:$0x1]
        %vm1678 = vcmask 523264
        %v1679 = vsel %vm1678, %v1419, 0.0
        %v1680 = vsel %vm1678, %v1420, 0.0
        %v1681 = vadd.f32 %v1679, %v1680
        %v1682 = vsel %vm1678, %v1421, 0.0
        %v1683 = vadd.f32 %v1681, %v1682
        %v1684 = vsel %vm1678, %v1422, 0.0
        %v1685 = vadd.f32 %v1683, %v1684
        %v1686 = vsel %vm1678, %v1423, 0.0
        %v1687 = vadd.f32 %v1685, %v1686
        %v1688 = vsel %vm1678, %v1424, 0.0
        %v1689 = vadd.f32 %v1687, %v1688
        %v1690 = vsel %vm1678, %v1425, 0.0
        %v1691 = vadd.f32 %v1689, %v1690
        %v1692 = vsel %vm1678, %v1426, 0.0
        %v1693 = vadd.f32 %v1691, %v1692
        %v1694 = vsel %vm1678, %v1427, 0.0
        %v1695 = vadd.f32 %v1693, %v1694
        %v1696 = vsel %vm1678, %v1428, 0.0
        %v1697 = vadd.f32 %v1695, %v1696
        %v1698 = vsel %vm1678, %v1429, 0.0
        %v1699 = vadd.f32 %v1697, %v1698
        %v1700 = vsel %vm1678, %v1430, 0.0
        %v1701 = vadd.f32 %v1699, %v1700
        %v1702 = vsel %vm1678, %v1431, 0.0
        %v1703 = vadd.f32 %v1701, %v1702
        %v1704 = vsel %vm1678, %v1432, 0.0
        %v1705 = vadd.f32 %v1703, %v1704
        %v1706 = vsel %vm1678, %v1433, 0.0
        %v1707 = vadd.f32 %v1705, %v1706
        %v1708 = vsel %vm1678, %v1434, 0.0
        %v1709 = vadd.f32 %v1707, %v1708
        %v1710 = vrot.slane %v1709, 4
        %v1711 = vadd.f32 %v1709, %v1710
        %v1712 = vrot.slane %v1711, 2
        %v1713 = vadd.f32 %v1711, %v1712
        %v1714 = vrot.slane %v1713, 1
        %v1715 = vadd.f32 %v1713, %v1714
        %v1716 = vadd.f32 %v1677, %v1715
        %vm1717 = vcmask 516096
        %1718 = vst.msk [vmem:[#allocation2] sm:$0x1] %vm1717, %v1716
        %v1719 = vld [vmem:[#allocation3] sm:$0x1]
        %v1720 = vsel %vm1678, %v1661, 0.0
        %v1721 = vsel %vm1678, %v1662, 0.0
        %v1722 = vadd.f32 %v1720, %v1721
        %v1723 = vsel %vm1678, %v1663, 0.0
        %v1724 = vadd.f32 %v1722, %v1723
        %v1725 = vsel %vm1678, %v1664, 0.0
        %v1726 = vadd.f32 %v1724, %v1725
        %v1727 = vsel %vm1678, %v1665, 0.0
        %v1728 = vadd.f32 %v1726, %v1727
        %v1729 = vsel %vm1678, %v1666, 0.0
        %v1730 = vadd.f32 %v1728, %v1729
        %v1731 = vsel %vm1678, %v1667, 0.0
        %v1732 = vadd.f32 %v1730, %v1731
        %v1733 = vsel %vm1678, %v1668, 0.0
        %v1734 = vadd.f32 %v1732, %v1733
        %v1735 = vsel %vm1678, %v1669, 0.0
        %v1736 = vadd.f32 %v1734, %v1735
        %v1737 = vsel %vm1678, %v1670, 0.0
        %v1738 = vadd.f32 %v1736, %v1737
        %v1739 = vsel %vm1678, %v1671, 0.0
        %v1740 = vadd.f32 %v1738, %v1739
        %v1741 = vsel %vm1678, %v1672, 0.0
        %v1742 = vadd.f32 %v1740, %v1741
        %v1743 = vsel %vm1678, %v1673, 0.0
        %v1744 = vadd.f32 %v1742, %v1743
        %v1745 = vsel %vm1678, %v1674, 0.0
        %v1746 = vadd.f32 %v1744, %v1745
        %v1747 = vsel %vm1678, %v1675, 0.0
        %v1748 = vadd.f32 %v1746, %v1747
        %v1749 = vsel %vm1678, %v1676, 0.0
        %v1750 = vadd.f32 %v1748, %v1749
        %v1751 = vrot.slane %v1750, 4
        %v1752 = vadd.f32 %v1750, %v1751
        %v1753 = vrot.slane %v1752, 2
        %v1754 = vadd.f32 %v1752, %v1753
        %v1755 = vrot.slane %v1754, 1
        %v1756 = vadd.f32 %v1754, %v1755
        %v1757 = vadd.f32 %v1719, %v1756
        %1758 = vst.msk [vmem:[#allocation3] sm:$0x1] %vm1717, %v1757
        %p1759 = scmp.eq.s32.totalorder %s27, 1
        // Predicated region
        $region61: #{tpu_custom_call.1} parent=51 // pred_check
          %p1760 = pneg %p1759
        $region62: #{tpu_custom_call.1} parent=51 // pred_check_branch
          %1762 = sbr.rel (%p1760) target = $region64
        $region63: #{tpu_custom_call.1} parent=51 // pred_region
          %v1763 = vld [vmem:[#allocation2] sm:$0x1]
          %v1764 = vld [vmem:[#allocation3] sm:$0x1]
          %v1765 = vld [vmem:[%s5] sm:$0xff]
          %v1766 = vld [vmem:[%s5 + $0x8] sm:$0xff]
          %v1767 = vld [vmem:[%s5 + $0x10] sm:$0xff]
          %v1768 = vld [vmem:[%s5 + $0x18] sm:$0xff]
          %v1769 = vld [vmem:[%s5 + $0x20] sm:$0xff]
          %v1770 = vld [vmem:[%s5 + $0x28] sm:$0xff]
          %v1771 = vld [vmem:[%s5 + $0x30] sm:$0xff]
          %v1772 = vld [vmem:[%s5 + $0x38] sm:$0xff]
          %v1773 = vmul.f32 %v1763, 0.00390625
          %v1774 = vxor.u32 %v1773, 2147483648
          %v1775 = vmul.f32 %v1774, 1.442695
          %v1776 = vpow.pop %v1775
          %v1777 = vadd.f32 %v1776, 1.0
          %v1778 = vrcp.pop %v1777
          %v1779 = vmul.f32 %v1777, %v1778
          %v1780 = vsub.f32 1.0, %v1779
          %v1781 = vmul.f32 %v1778, %v1780
          %v1782 = vadd.f32 %v1778, %v1781
          %vm1783 = vweird.f32 %v1777
          %vm1784 = vweird.f32 %v1778
          %vm1785 = vmor %vm1783, %vm1784
          %v1786 = vsel %vm1785, %v1778, %v1782
          %v1787 = vand.u32 2147483647, %v1777
          %vm1788 = vcmp.eq.f32.partialorder %v1787, 8.507059e+37
          %v1789 = vand.u32 %v1777, 2147483648
          %v1790 = vor.u32 1.1754944e-38, %v1789
          %v1791 = vsel %vm1788, %v1790, %v1786
          %v1792 = vmul.f32 1.0, %v1791
          %v1793 = vmul.f32 %v1764, 0.00390625
          %v1794 = vxor.u32 %v1793, 2147483648
          %v1795 = vmul.f32 %v1794, 1.442695
          %v1796 = vpow.pop %v1795
          %v1797 = vadd.f32 %v1796, 1.0
          %v1798 = vrcp.pop %v1797
          %v1799 = vmul.f32 %v1797, %v1798
          %v1800 = vsub.f32 1.0, %v1799
          %v1801 = vmul.f32 %v1798, %v1800
          %v1802 = vadd.f32 %v1798, %v1801
          %vm1803 = vweird.f32 %v1797
          %vm1804 = vweird.f32 %v1798
          %vm1805 = vmor %vm1803, %vm1804
          %v1806 = vsel %vm1805, %v1798, %v1802
          %v1807 = vand.u32 2147483647, %v1797
          %vm1808 = vcmp.eq.f32.partialorder %v1807, 8.507059e+37
          %v1809 = vand.u32 %v1797, 2147483648
          %v1810 = vor.u32 1.1754944e-38, %v1809
          %v1811 = vsel %vm1808, %v1810, %v1806
          %v1812 = vmul.f32 1.0, %v1811
          %v1813 = vadd.f32 %v1792, %v1812
          %v1815 = vsel %vm1678, %v1813, 0
          %v1818 = vsel %vm1678, %v1765, 0
          %v1821 = vsel %vm1678, %v1766, 0
          %v1824 = vsel %vm1678, %v1767, 0
          %v1827 = vsel %vm1678, %v1768, 0
          %v1830 = vsel %vm1678, %v1769, 0
          %v1833 = vsel %vm1678, %v1770, 0
          %v1836 = vsel %vm1678, %v1771, 0
          %v1839 = vsel %vm1678, %v1772, 0
          %1841 = vmatpush.xpose.msra.mxu0 0.0
          %1842 = vmatpush.xpose.msra.mxu0 0.0
          %1843 = vmatpush.xpose.msra.mxu0 0.0
          %1844 = vmatpush.xpose.msra.mxu0 0.0
          %1845 = vmatpush.xpose.msra.mxu0 0.0
          %1846 = vmatpush.xpose.msra.mxu0 0.0
          %1847 = vmatpush.xpose.msra.mxu0 0.0
          %1848 = vmatpush.xpose.msra.mxu0 0.0
          %1849 = vmatpush.xpose.msra.mxu0 %v1839
          %1850 = vmatpush.xpose.msra.mxu0 %v1836
          %1851 = vmatpush.xpose.msra.mxu0 %v1833
          %1852 = vmatpush.xpose.msra.mxu0 %v1830
          %1853 = vmatpush.xpose.msra.mxu0 %v1827
          %1854 = vmatpush.xpose.msra.mxu0 %v1824
          %1855 = vmatpush.xpose.msra.mxu0 %v1821
          %1856 = vmatpush.xpose.msra.mxu0 %v1818
          %1857 = vmatmul.f32.gmra.mxu0 %v1815
          %v1858 = vpop.f32.mrf.mxu0
          %v1859 = vadd.f32 0.0, %v1858
          %1860 = vdwg.mxu0
          %1861 = vst.msk [vmem:[#allocation8] sm:$0x1] %vm1717, %v1859
        $region64: #{tpu_custom_call.1} parent=51 // pred_fallthru
          _
        // Predicated region
        $region65: #{tpu_custom_call.1} parent=51 // pred_check
          %p1862 = pneg %p218
        $region66: #{tpu_custom_call.1} parent=51 // pred_check_branch
          %1864 = sbr.rel (%p1862) target = $region68
        $region67: #{tpu_custom_call.1} parent=51 // pred_region
          _
        $region68: #{tpu_custom_call.1} parent=51 // pred_fallthru
          _
        // Predicated region
        $region69: #{tpu_custom_call.1} parent=51 // pred_check
          %p1865 = pneg %p239
        $region70: #{tpu_custom_call.1} parent=51 // pred_check_branch
          %1867 = sbr.rel (%p1865) target = $region72
        $region71: #{tpu_custom_call.1} parent=51 // pred_region
          _
        $region72: #{tpu_custom_call.1} parent=51 // pred_fallthru
          _
        // Predicated region
        $region73: #{tpu_custom_call.1} parent=51 // pred_check
          %p1868 = pneg %p260
        $region74: #{tpu_custom_call.1} parent=51 // pred_check_branch
          %1870 = sbr.rel (%p1868) target = $region76
        $region75: #{tpu_custom_call.1} parent=51 // pred_region
          %1872 = vsyncadd [#allocation7], 0
          %s1874 = sshll.u32 [#allocation8], 4
          %s1875 = int_to_ptr.vmem [resolvable:$true] %s1874
          %s1876 = sshll.u32 %s10, 4
          %s1877 = int_to_ptr.hbm [resolvable:$true] %s1876
          %1879 = dma.vmem_to_hbm [thread:$0]  %s1875, 16, %s1877, [#allocation7]
        $region76: #{tpu_custom_call.1} parent=51 // pred_fallthru
          _
        // Predicated region
        $region77: #{tpu_custom_call.1} parent=51 // pred_check
          %p1880 = pneg %p218
        $region78: #{tpu_custom_call.1} parent=51 // pred_check_branch
          %1882 = sbr.rel (%p1880) target = $region80
        $region79: #{tpu_custom_call.1} parent=51 // pred_region
          _
        $region80: #{tpu_custom_call.1} parent=51 // pred_fallthru
          _
        // Predicated region
        $region81: #{tpu_custom_call.1} parent=51 // pred_check
          %p1883 = pneg %p239
        $region82: #{tpu_custom_call.1} parent=51 // pred_check_branch
          %1885 = sbr.rel (%p1883) target = $region84
        $region83: #{tpu_custom_call.1} parent=51 // pred_region
          _
        $region84: #{tpu_custom_call.1} parent=51 // pred_fallthru
          _
        // Predicated region
        $region85: #{tpu_custom_call.1} parent=51 // pred_check
          %p1886 = pneg %p260
        $region86: #{tpu_custom_call.1} parent=51 // pred_check_branch
          %1888 = sbr.rel (%p1886) target = $region88
        $region87: #{tpu_custom_call.1} parent=51 // pred_region
          %1890 = dma.done [#allocation7], 16
        $region88: #{tpu_custom_call.1} parent=51 // pred_fallthru
          _
      $region52: #{tpu_custom_call.1} parent=5 // pred_fallthru
        _
      %p1891 = scmp.le.s32.totalorder 2, %s22
      // Predicated region
      $region89: #{tpu_custom_call.1} parent=5 // pred_check
        %p1892 = pneg %p1891
      $region90: #{tpu_custom_call.1} parent=5 // pred_check_branch
        %1894 = sbr.rel (%p1892) target = $region92
      $region91: #{tpu_custom_call.1} parent=5 // pred_region
        %s1895 = ssub.s32 %s22, 2
      $region92: #{tpu_custom_call.1} parent=5 // pred_fallthru
        _
    $region6: #{tpu_custom_call.1} parent=1 // loop_footer
      %s26 = sadd.s32 1, %s22
    $region7: #{tpu_custom_call.1} parent=1 // loop_footer_branch
      %21 = sbr.rel target = $region3
    $region8: #{tpu_custom_call.1} parent=1 // loop_exit
      _
    %1896 = vsyncpa [#allocation6], 1
    %s1897 = scalar_lea.sflag [#allocation6], 1
    %1898 = vsyncpa %s1897, 1
    %1899 = vsyncpa [#allocation7], 1
    %s1900 = scalar_lea.sflag [#allocation7], 1
    %1901 = vsyncpa %s1900, 1

</llo_original>
